<compile_context>
chip_gen: v7x
topology: tpu7x:2x2x1
jax: 0.10.0
libtpu: 0.0.40
codegen_flags: <defaults>
</compile_context>

<pallas_src>
import numpy as np
import jax
import jax.numpy as jnp
from jax.experimental import pallas as pl
from jax.experimental.pallas import tpu as pltpu

_LP = 128   # lane width every activation / weight table is padded to


# --------------------------------------------------------------------------
# Host-side constant tables (built once from the parameters).
# --------------------------------------------------------------------------

def _tap_weights(wt, w_in, cin_pad):
    """(4, 128, 128) column-Toeplitz weights for the 4 kernel-row taps.

    B_i[w*cin_pad + ci, ow*cout + co] = wt[co, ci, i, j], w = 2*ow + j - 1
    (horizontal zero padding folded in as missing entries)."""
    cout, cin = wt.shape[0], wt.shape[1]
    ow_n = w_in // 2
    assert w_in * cin_pad <= _LP and ow_n * cout <= _LP
    b = np.zeros((4, _LP, _LP), np.float32)
    for i in range(4):
        for o in range(ow_n):
            for j in range(4):
                w = 2 * o + j - 1
                if 0 <= w < w_in:
                    b[i, w * cin_pad:w * cin_pad + cin,
                      o * cout:(o + 1) * cout] = wt[:, :, i, j].T
    return b


def _sigma(w2d, iters=50):
    """Largest singular value via power iteration (spectral_norm, eval-style)."""
    w2d = np.asarray(w2d, np.float64)
    u = np.ones((w2d.shape[0],))
    v = np.zeros((w2d.shape[1],))
    for _ in range(iters):
        v = w2d.T @ u
        v = v / (np.linalg.norm(v) + 1e-12)
        u = w2d @ v
        u = u / (np.linalg.norm(u) + 1e-12)
    return float(u @ (w2d @ v))


def init_params(key, ndf, c_dim, project_dim, nc):
    # TODO(synk): PyTorch's spectral_norm re-estimates sigma with a power
    # iteration every training forward; here it is folded into the weights once
    # at init (eval-mode semantics).
    ks = jax.random.split(key, 6)

    def conv_param(k, cin, cout):
        kw, kb = jax.random.split(k)
        w = 0.05 * np.asarray(jax.random.normal(kw, (cout, cin, 4, 4), jnp.float32))
        w = (w / _sigma(w.reshape(cout, -1))).astype(np.float32)   # spectral_norm
        b = 0.05 * np.asarray(jax.random.normal(kb, (cout,), jnp.float32))
        return w, b.astype(np.float32)

    convs = [conv_param(ks[0], nc, ndf),
             conv_param(ks[1], ndf, ndf),
             conv_param(ks[2], ndf, ndf * 2),
             conv_param(ks[3], ndf * 2, ndf * 4)]
    f_in = ndf * 4 * 2 * 2
    wproj = 0.05 * np.asarray(jax.random.normal(ks[4], (2 * project_dim, f_in), jnp.float32))
    wproj = (wproj / _sigma(wproj)).astype(np.float32)             # spectral_norm
    wout = 0.05 * np.asarray(jax.random.normal(ks[5], (1, project_dim + c_dim), jnp.float32))
    return {"convs": convs, "wproj": wproj, "wout": wout.astype(np.float32)}


def prepare_tables(params, n, h_in, w_in):
    """Constant bf16/f32 tables the fused kernel consumes."""
    convs = params["convs"]
    n_layers = len(convs)
    cin_pads = [_LP // w_in] + [convs[l][0].shape[0] for l in range(n_layers - 1)]
    assert _LP % w_in == 0 and cin_pads[0] >= convs[0][0].shape[1]

    bcat = np.zeros((2 * n_layers, _LP, 2 * _LP), np.float32)
    biasv = np.zeros((n_layers, 1, _LP), np.float32)
    s_tabs, feat_meta = [], []
    hh, ww = h_in, w_in
    for l, (wt, b) in enumerate(convs):
        cout = wt.shape[0]
        oh, ow = hh // 2, ww // 2
        taps = _tap_weights(wt, ww, cin_pads[l])       # (4, 128, 128)
        bcat[2 * l, :, :_LP] = taps[0]                  # lo half: taps 0 and 2
        bcat[2 * l, :, _LP:] = taps[2]
        bcat[2 * l + 1, :, :_LP] = taps[1]              # hi half: taps 1 and 3
        bcat[2 * l + 1, :, _LP:] = taps[3]
        biasv[l, 0, :ow * cout] = np.tile(b, ow)
        feat_meta.append((oh, ow, cout))
        if l < n_layers - 1:
            # 0/1 gathers building the next layer's packed (lo, hi) halves:
            #   lo row r = padded row 2r   = act row 2r-1 (r>=1)
            #   hi row r = padded row 2r+1 = act row 2r   (r<=R-2)
            r = oh // 2 + 1
            s = np.zeros((2, n * r, n * oh), np.float32)
            for bi in range(n):
                for rr in range(r):
                    if rr >= 1:
                        s[0, bi * r + rr, bi * oh + 2 * rr - 1] = 1.0
                    if rr <= r - 2:
                        s[1, bi * r + rr, bi * oh + 2 * rr] = 1.0
            s_tabs.append(jnp.asarray(s, jnp.bfloat16))
        hh, ww = oh, ow

    # Head: fold nn.Flatten's NCHW ordering into the projection tables.
    cout4 = convs[-1][0].shape[0]
    p2 = params["wproj"].shape[0]
    rh = np.zeros((2, n, 2 * n), np.float32)
    wp = np.zeros((2, _LP, p2), np.float32)
    for o in range(2):
        for bi in range(n):
            rh[o, bi, 2 * bi + o] = 1.0
        for ow in range(2):
            for co in range(cout4):
                wp[o, ow * cout4 + co, :] = params["wproj"][:, co * 4 + o * 2 + ow]

    return {
        "bcat": jnp.asarray(bcat, jnp.bfloat16),
        "biasv": jnp.asarray(biasv, jnp.float32),
        "s_tabs": s_tabs,
        "rh": jnp.asarray(rh, jnp.bfloat16),
        "wp": jnp.asarray(wp, jnp.bfloat16),
        "wout": jnp.asarray(params["wout"], jnp.float32),
        "feat_meta": feat_meta,
    }


# --------------------------------------------------------------------------
# The single fused Pallas kernel.
# --------------------------------------------------------------------------

def _disc_kernel(x_ref, c_ref, bcat_ref, bias_ref, s2_ref, s3_ref, s4_ref,
                 rh_ref, wp_ref, wout_ref,
                 f1_ref, f2_ref, f3_ref, f4_ref, out_ref, z_scr):
    nimg = c_ref.shape[0]

    def conv_layer(g_lo, g_hi, l, oh, feat_ref):
        # One wide GEMM per layer (two accumulating dots over the lo/hi
        # packed-row halves); bias + LeakyReLU epilogue in f32.
        rows = g_lo.shape[0]                              # n * (oh + 1)
        r = oh + 1
        z = jnp.dot(g_lo, bcat_ref[2 * l], preferred_element_type=jnp.float32)
        z = z + jnp.dot(g_hi, bcat_ref[2 * l + 1], preferred_element_type=jnp.float32)
        z_scr[pl.ds(0, rows), :] = z
        bias = bias_ref[l]                                # (1, 128) f32
        for b in range(nimg):                             # tiny epilogue slices
            lo = z_scr[pl.ds(b * r, oh), pl.ds(0, _LP)]
            hi = z_scr[pl.ds(b * r + 1, oh), pl.ds(_LP, _LP)]
            a = lo + hi + bias
            feat_ref[pl.ds(b * oh, oh), :] = jnp.maximum(a, 0.2 * a)  # LeakyReLU
        return feat_ref[...].astype(jnp.bfloat16)

    def regroup(act_bf, s_ref):
        # 0/1 row gathers -> next layer's packed (lo, hi) padded-row halves.
        g_lo = jnp.dot(s_ref[0], act_bf, preferred_element_type=jnp.float32)
        g_hi = jnp.dot(s_ref[1], act_bf, preferred_element_type=jnp.float32)
        return g_lo.astype(jnp.bfloat16), g_hi.astype(jnp.bfloat16)

    a1 = conv_layer(x_ref[0], x_ref[1], 0, f1_ref.shape[0] // nimg, f1_ref)
    a2 = conv_layer(*regroup(a1, s2_ref), 1, f2_ref.shape[0] // nimg, f2_ref)
    a3 = conv_layer(*regroup(a2, s3_ref), 2, f3_ref.shape[0] // nimg, f3_ref)
    a4 = conv_layer(*regroup(a3, s4_ref), 3, f4_ref.shape[0] // nimg, f4_ref)

    # Head: Linear(no bias) -> GLU(dim=1) -> concat(c) -> Linear(no bias).
    p2 = wp_ref.shape[2]
    proj = jnp.zeros((nimg, p2), jnp.float32)
    for oh in range(2):                      # NCHW flatten folded into rh/wp
        g = jnp.dot(rh_ref[oh], a4, preferred_element_type=jnp.float32)
        proj = proj + jnp.dot(g.astype(jnp.bfloat16), wp_ref[oh],
                              preferred_element_type=jnp.float32)
    p = p2 // 2
    hgl = proj[:, :p] * jax.nn.sigmoid(proj[:, p:])       # GLU, f32
    wout = wout_ref[...]
    cvec = c_ref[...]
    # 1-column output Linear as VPU multiply + lane reduction (no N=1 matmul).
    out_ref[...] = (jnp.sum(hgl * wout[:, :p], axis=1, keepdims=True)
                    + jnp.sum(cvec * wout[:, p:], axis=1, keepdims=True))


def _full_spec(shape):
    nd = len(shape)
    return pl.BlockSpec(tuple(shape), lambda *_, nd=nd: (0,) * nd)


def discriminator_forward(tables, x_nchw, c):
    n, nc, h, w = x_nchw.shape
    cp = _LP // w                                   # channel pad so W*Cpad = 128
    assert w * cp == _LP and cp >= nc
    oh1 = h // 2

    # Host-side packing only (review: pre-pad rows host-side, lane-pad K):
    # NCHW -> lane-padded (w, c) rows with a zero row above/below each image,
    # split into the (lo, hi) padded-row halves of the layer-1 packed GEMM.
    xh = jnp.transpose(x_nchw, (0, 2, 3, 1))
    xh = jnp.pad(xh, ((0, 0), (0, 0), (0, 0), (0, cp - nc)))
    rows = xh.reshape(n, h, _LP)
    zrow = jnp.zeros((n, 1, _LP), rows.dtype)
    padded = jnp.concatenate([zrow, rows, zrow], axis=1)        # (n, h+2, 128)
    xlo = padded[:, 0::2, :].reshape(n * (oh1 + 1), _LP)        # padded rows 2r
    xhi = padded[:, 1::2, :].reshape(n * (oh1 + 1), _LP)        # padded rows 2r+1
    xpk = jnp.stack([xlo, xhi], axis=0).astype(jnp.bfloat16)    # (2, n*(h/2+1), 128)
    c2d = c.reshape(n, -1).astype(jnp.float32)

    args = [xpk, c2d, tables["bcat"], tables["biasv"], *tables["s_tabs"],
            tables["rh"], tables["wp"], tables["wout"]]

    feat_meta = tables["feat_meta"]
    out_shape = tuple([jax.ShapeDtypeStruct((n * oh, _LP), jnp.float32)
                       for (oh, _, _) in feat_meta]
                      + [jax.ShapeDtypeStruct((n, 1), jnp.float32)])

    # Advisory cost estimate.
    flops = 0
    for (oh, _, _) in feat_meta:
        flops += 2 * 2 * (n * (oh + 1)) * _LP * (2 * _LP)       # conv GEMMs
    for s in tables["s_tabs"]:
        flops += 2 * 2 * s.shape[1] * s.shape[2] * _LP           # regroup gathers
    p2 = tables["wp"].shape[2]
    flops += 2 * 2 * (n * 2 * n * _LP + n * _LP * p2)            # head
    bytes_accessed = sum(int(np.prod(a.shape)) * a.dtype.itemsize for a in args)
    bytes_accessed += sum(int(np.prod(s.shape)) * 4 for s in out_shape)

    outs = pl.pallas_call(
        _disc_kernel,
        out_shape=out_shape,
        in_specs=[_full_spec(a.shape) for a in args],
        out_specs=tuple(_full_spec(s.shape) for s in out_shape),
        scratch_shapes=[pltpu.VMEM((n * (oh1 + 1), 2 * _LP), jnp.float32)],
        cost_estimate=pl.CostEstimate(flops=flops,
                                      transcendentals=n * (p2 // 2),
                                      bytes_accessed=bytes_accessed),
        # Actual VMEM use (tables + activations, double-buffered) is ~1.2 MiB.
        compiler_params=pltpu.CompilerParams(vmem_limit_bytes=4 * 1024 * 1024),
    )(*args)

    *feats2d, out = outs
    # Only output-format conversion left outside the kernel: drop lane padding
    # and reshape the packed (N*OH, OW*C) features back to NCHW.
    features = [jnp.transpose(f[:, :ow * cc].reshape(n, oh, ow, cc), (0, 3, 1, 2))
                for f, (oh, ow, cc) in zip(feats2d, feat_meta)]
    return out, features


# --------------------------------------------------------------------------
# Pure-JAX f32 reference (numerical sanity check of the fused kernel).
# --------------------------------------------------------------------------

def reference_forward(params, x, c):
    feats = []
    h = x
    for wt, b in params["convs"]:
        h = jax.lax.conv_general_dilated(
            h, jnp.asarray(wt), window_strides=(2, 2), padding=((1, 1), (1, 1)),
            dimension_numbers=("NCHW", "OIHW", "NCHW"))
        h = h + jnp.asarray(b).reshape(1, -1, 1, 1)
        h = jnp.where(h >= 0, h, 0.2 * h)
        feats.append(h)
    n = h.shape[0]
    xf = h.reshape(n, -1)
    proj = xf @ jnp.asarray(params["wproj"]).T
    p = proj.shape[1] // 2
    g = proj[:, :p] * jax.nn.sigmoid(proj[:, p:])
    cat = jnp.concatenate([g, c.reshape(n, -1)], axis=1)
    return cat @ jnp.asarray(params["wout"]).T, feats


# --------------------------------------------------------------------------

if __name__ == "__main__":
    ndf, c_dim, project_dim, nc = 8, 4, 16, 3
    batch = 2
    # project-layer input dim is ndf*4*2*2 => input spatial must be 32x32
    key = jax.random.PRNGKey(0)
    kx, kc, kp = jax.random.split(key, 3)
    x = jax.random.normal(kx, (batch, nc, 32, 32), jnp.float32)
    c = jax.random.normal(kc, (batch, c_dim), jnp.float32)

    params = init_params(kp, ndf, c_dim, project_dim, nc)
    tables = prepare_tables(params, batch, 32, 32)

    fwd = jax.jit(lambda xx, cc: discriminator_forward(tables, xx, cc))
    out, features = fwd(x, c)
    out = jax.block_until_ready(out)
    features = [jax.block_until_ready(f) for f in features]

    assert out.shape == (batch, 1)
    assert [f.shape for f in features] == [
        (batch, ndf, 16, 16), (batch, ndf, 8, 8),
        (batch, ndf * 2, 4, 4), (batch, ndf * 4, 2, 2)]

    # Numerical check vs. the f32 reference (kernel matmuls run in bf16).
    ref_out, ref_feats = reference_forward(params, x, c)
    for f, rf in zip(features, ref_feats):
        np.testing.assert_allclose(np.asarray(f), np.asarray(rf), rtol=0.05, atol=0.03)
    np.testing.assert_allclose(np.asarray(out), np.asarray(ref_out), rtol=0.05, atol=0.03)

    print("KERNEL_OK")
</pallas_src>

<mosaic_0001>
module attributes {stable_mosaic.version = 11 : i64} {
  func.func @_disc_kernel(%arg0: memref<2x34x128xbf16, #tpu.memory_space<vmem>>, %arg1: memref<2x4xf32, #tpu.memory_space<vmem>>, %arg2: memref<8x128x256xbf16, #tpu.memory_space<vmem>>, %arg3: memref<4x1x128xf32, #tpu.memory_space<vmem>>, %arg4: memref<2x18x32xbf16, #tpu.memory_space<vmem>>, %arg5: memref<2x10x16xbf16, #tpu.memory_space<vmem>>, %arg6: memref<2x6x8xbf16, #tpu.memory_space<vmem>>, %arg7: memref<2x2x4xbf16, #tpu.memory_space<vmem>>, %arg8: memref<2x128x32xbf16, #tpu.memory_space<vmem>>, %arg9: memref<1x20xf32, #tpu.memory_space<vmem>>, %arg10: memref<32x128xf32, #tpu.memory_space<vmem>>, %arg11: memref<16x128xf32, #tpu.memory_space<vmem>>, %arg12: memref<8x128xf32, #tpu.memory_space<vmem>>, %arg13: memref<4x128xf32, #tpu.memory_space<vmem>>, %arg14: memref<2x1xf32, #tpu.memory_space<vmem>>, %arg15: memref<34x256xf32, #tpu.memory_space<vmem>>) attributes {dimension_semantics = [], scalar_prefetch = 0 : i64, scratch_operands = 1 : i64, tpu.core_type = #tpu.core_type<tc>} {
    %c0 = arith.constant 0 : index
    %c0_0 = arith.constant 0 : index
    %c0_1 = arith.constant 0 : index
    %0 = vector.load %arg0[%c0, %c0_0, %c0_1] : memref<2x34x128xbf16, #tpu.memory_space<vmem>>, vector<1x34x128xbf16>
    %1 = vector.shape_cast %0 : vector<1x34x128xbf16> to vector<34x128xbf16>
    %c1 = arith.constant 1 : index
    %c0_2 = arith.constant 0 : index
    %c0_3 = arith.constant 0 : index
    %2 = vector.load %arg0[%c1, %c0_2, %c0_3] : memref<2x34x128xbf16, #tpu.memory_space<vmem>>, vector<1x34x128xbf16>
    %3 = vector.shape_cast %2 : vector<1x34x128xbf16> to vector<34x128xbf16>
    %c0_4 = arith.constant 0 : index
    %c0_5 = arith.constant 0 : index
    %c0_6 = arith.constant 0 : index
    %4 = vector.load %arg2[%c0_4, %c0_5, %c0_6] : memref<8x128x256xbf16, #tpu.memory_space<vmem>>, vector<1x128x256xbf16>
    %5 = vector.shape_cast %4 : vector<1x128x256xbf16> to vector<128x256xbf16>
    %cst = arith.constant dense<0.000000e+00> : vector<34x256xf32>
    %6 = tpu.matmul %1, %5, %cst {dimension_numbers = #tpu.dot_dimension_numbers<[1], [0], [0], [1], [0, 0, 1, 1], [], []>} : vector<34x128xbf16>, vector<128x256xbf16>, vector<34x256xf32> -> vector<34x256xf32>
    %c1_7 = arith.constant 1 : index
    %c0_8 = arith.constant 0 : index
    %c0_9 = arith.constant 0 : index
    %7 = vector.load %arg2[%c1_7, %c0_8, %c0_9] : memref<8x128x256xbf16, #tpu.memory_space<vmem>>, vector<1x128x256xbf16>
    %8 = vector.shape_cast %7 : vector<1x128x256xbf16> to vector<128x256xbf16>
    %cst_10 = arith.constant dense<0.000000e+00> : vector<34x256xf32>
    %9 = tpu.matmul %3, %8, %cst_10 {dimension_numbers = #tpu.dot_dimension_numbers<[1], [0], [0], [1], [0, 0, 1, 1], [], []>} : vector<34x128xbf16>, vector<128x256xbf16>, vector<34x256xf32> -> vector<34x256xf32>
    %10 = arith.addf %6, %9 : vector<34x256xf32>
    %c0_11 = arith.constant 0 : index
    %c0_12 = arith.constant 0 : index
    %11 = vector.load %arg15[%c0_11, %c0_12] : memref<34x256xf32, #tpu.memory_space<vmem>>, vector<34x256xf32>
    tpu.vector_store %arg15[%c0_11, %c0_12], %10 {strides = array<i32>} : memref<34x256xf32, #tpu.memory_space<vmem>>, vector<34x256xf32>,
    %c0_13 = arith.constant 0 : index
    %c0_14 = arith.constant 0 : index
    %c0_15 = arith.constant 0 : index
    %12 = vector.load %arg3[%c0_13, %c0_14, %c0_15] : memref<4x1x128xf32, #tpu.memory_space<vmem>>, vector<1x1x128xf32>
    %13 = vector.shape_cast %12 : vector<1x1x128xf32> to vector<1x128xf32>
    %c0_16 = arith.constant 0 : index
    %c0_17 = arith.constant 0 : index
    %14 = vector.load %arg15[%c0_16, %c0_17] : memref<34x256xf32, #tpu.memory_space<vmem>>, vector<16x128xf32>
    %c1_18 = arith.constant 1 : index
    %c128 = arith.constant 128 : index
    %15 = vector.load %arg15[%c1_18, %c128] : memref<34x256xf32, #tpu.memory_space<vmem>>, vector<16x128xf32>
    %16 = arith.addf %14, %15 : vector<16x128xf32>
    %17 = vector.broadcast %13 : vector<1x128xf32> to vector<16x128xf32>
    %18 = arith.addf %16, %17 : vector<16x128xf32>
    %cst_19 = arith.constant 2.000000e-01 : f32
    %19 = vector.broadcast %cst_19 : f32 to vector<16x128xf32>
    %20 = arith.mulf %19, %18 : vector<16x128xf32>
    %21 = arith.maximumf %18, %20 : vector<16x128xf32>
    %c0_20 = arith.constant 0 : index
    %c0_21 = arith.constant 0 : index
    %22 = vector.load %arg10[%c0_20, %c0_21] : memref<32x128xf32, #tpu.memory_space<vmem>>, vector<16x128xf32>
    tpu.vector_store %arg10[%c0_20, %c0_21], %21 {strides = array<i32>} : memref<32x128xf32, #tpu.memory_space<vmem>>, vector<16x128xf32>,
    %c17 = arith.constant 17 : index
    %c0_22 = arith.constant 0 : index
    %23 = vector.load %arg15[%c17, %c0_22] : memref<34x256xf32, #tpu.memory_space<vmem>>, vector<16x128xf32>
    %c18 = arith.constant 18 : index
    %c128_23 = arith.constant 128 : index
    %24 = vector.load %arg15[%c18, %c128_23] : memref<34x256xf32, #tpu.memory_space<vmem>>, vector<16x128xf32>
    %25 = arith.addf %23, %24 : vector<16x128xf32>
    %26 = vector.broadcast %13 : vector<1x128xf32> to vector<16x128xf32>
    %27 = arith.addf %25, %26 : vector<16x128xf32>
    %cst_24 = arith.constant 2.000000e-01 : f32
    %28 = vector.broadcast %cst_24 : f32 to vector<16x128xf32>
    %29 = arith.mulf %28, %27 : vector<16x128xf32>
    %30 = arith.maximumf %27, %29 : vector<16x128xf32>
    %c16 = arith.constant 16 : index
    %c0_25 = arith.constant 0 : index
    %31 = vector.load %arg10[%c16, %c0_25] : memref<32x128xf32, #tpu.memory_space<vmem>>, vector<16x128xf32>
    tpu.vector_store %arg10[%c16, %c0_25], %30 {strides = array<i32>} : memref<32x128xf32, #tpu.memory_space<vmem>>, vector<16x128xf32>,
    %c0_26 = arith.constant 0 : index
    %c0_27 = arith.constant 0 : index
    %32 = vector.load %arg10[%c0_26, %c0_27] : memref<32x128xf32, #tpu.memory_space<vmem>>, vector<32x128xf32>
    %33 = arith.truncf %32 : vector<32x128xf32> to vector<32x128xbf16>
    %c0_28 = arith.constant 0 : index
    %c0_29 = arith.constant 0 : index
    %c0_30 = arith.constant 0 : index
    %34 = vector.load %arg4[%c0_28, %c0_29, %c0_30] : memref<2x18x32xbf16, #tpu.memory_space<vmem>>, vector<1x18x32xbf16>
    %35 = vector.shape_cast %34 : vector<1x18x32xbf16> to vector<18x32xbf16>
    %cst_31 = arith.constant dense<0.000000e+00> : vector<18x128xf32>
    %36 = tpu.matmul %35, %33, %cst_31 {dimension_numbers = #tpu.dot_dimension_numbers<[1], [0], [0], [1], [0, 0, 1, 1], [], []>} : vector<18x32xbf16>, vector<32x128xbf16>, vector<18x128xf32> -> vector<18x128xf32>
    %c1_32 = arith.constant 1 : index
    %c0_33 = arith.constant 0 : index
    %c0_34 = arith.constant 0 : index
    %37 = vector.load %arg4[%c1_32, %c0_33, %c0_34] : memref<2x18x32xbf16, #tpu.memory_space<vmem>>, vector<1x18x32xbf16>
    %38 = vector.shape_cast %37 : vector<1x18x32xbf16> to vector<18x32xbf16>
    %cst_35 = arith.constant dense<0.000000e+00> : vector<18x128xf32>
    %39 = tpu.matmul %38, %33, %cst_35 {dimension_numbers = #tpu.dot_dimension_numbers<[1], [0], [0], [1], [0, 0, 1, 1], [], []>} : vector<18x32xbf16>, vector<32x128xbf16>, vector<18x128xf32> -> vector<18x128xf32>
    %40 = arith.truncf %36 : vector<18x128xf32> to vector<18x128xbf16>
    %41 = arith.truncf %39 : vector<18x128xf32> to vector<18x128xbf16>
    %c2 = arith.constant 2 : index
    %c0_36 = arith.constant 0 : index
    %c0_37 = arith.constant 0 : index
    %42 = vector.load %arg2[%c2, %c0_36, %c0_37] : memref<8x128x256xbf16, #tpu.memory_space<vmem>>, vector<1x128x256xbf16>
    %43 = vector.shape_cast %42 : vector<1x128x256xbf16> to vector<128x256xbf16>
    %cst_38 = arith.constant dense<0.000000e+00> : vector<18x256xf32>
    %44 = tpu.matmul %40, %43, %cst_38 {dimension_numbers = #tpu.dot_dimension_numbers<[1], [0], [0], [1], [0, 0, 1, 1], [], []>} : vector<18x128xbf16>, vector<128x256xbf16>, vector<18x256xf32> -> vector<18x256xf32>
    %c3 = arith.constant 3 : index
    %c0_39 = arith.constant 0 : index
    %c0_40 = arith.constant 0 : index
    %45 = vector.load %arg2[%c3, %c0_39, %c0_40] : memref<8x128x256xbf16, #tpu.memory_space<vmem>>, vector<1x128x256xbf16>
    %46 = vector.shape_cast %45 : vector<1x128x256xbf16> to vector<128x256xbf16>
    %cst_41 = arith.constant dense<0.000000e+00> : vector<18x256xf32>
    %47 = tpu.matmul %41, %46, %cst_41 {dimension_numbers = #tpu.dot_dimension_numbers<[1], [0], [0], [1], [0, 0, 1, 1], [], []>} : vector<18x128xbf16>, vector<128x256xbf16>, vector<18x256xf32> -> vector<18x256xf32>
    %48 = arith.addf %44, %47 : vector<18x256xf32>
    %c0_42 = arith.constant 0 : index
    %c0_43 = arith.constant 0 : index
    %49 = vector.load %arg15[%c0_42, %c0_43] : memref<34x256xf32, #tpu.memory_space<vmem>>, vector<18x256xf32>
    tpu.vector_store %arg15[%c0_42, %c0_43], %48 {strides = array<i32>} : memref<34x256xf32, #tpu.memory_space<vmem>>, vector<18x256xf32>,
    %c1_44 = arith.constant 1 : index
    %c0_45 = arith.constant 0 : index
    %c0_46 = arith.constant 0 : index
    %50 = vector.load %arg3[%c1_44, %c0_45, %c0_46] : memref<4x1x128xf32, #tpu.memory_space<vmem>>, vector<1x1x128xf32>
    %51 = vector.shape_cast %50 : vector<1x1x128xf32> to vector<1x128xf32>
    %c0_47 = arith.constant 0 : index
    %c0_48 = arith.constant 0 : index
    %52 = vector.load %arg15[%c0_47, %c0_48] : memref<34x256xf32, #tpu.memory_space<vmem>>, vector<8x128xf32>
    %c1_49 = arith.constant 1 : index
    %c128_50 = arith.constant 128 : index
    %53 = vector.load %arg15[%c1_49, %c128_50] : memref<34x256xf32, #tpu.memory_space<vmem>>, vector<8x128xf32>
    %54 = arith.addf %52, %53 : vector<8x128xf32>
    %55 = vector.broadcast %51 : vector<1x128xf32> to vector<8x128xf32>
    %56 = arith.addf %54, %55 : vector<8x128xf32>
    %cst_51 = arith.constant 2.000000e-01 : f32
    %57 = vector.broadcast %cst_51 : f32 to vector<8x128xf32>
    %58 = arith.mulf %57, %56 : vector<8x128xf32>
    %59 = arith.maximumf %56, %58 : vector<8x128xf32>
    %c0_52 = arith.constant 0 : index
    %c0_53 = arith.constant 0 : index
    %60 = vector.load %arg11[%c0_52, %c0_53] : memref<16x128xf32, #tpu.memory_space<vmem>>, vector<8x128xf32>
    tpu.vector_store %arg11[%c0_52, %c0_53], %59 {strides = array<i32>} : memref<16x128xf32, #tpu.memory_space<vmem>>, vector<8x128xf32>,
    %c9 = arith.constant 9 : index
    %c0_54 = arith.constant 0 : index
    %61 = vector.load %arg15[%c9, %c0_54] : memref<34x256xf32, #tpu.memory_space<vmem>>, vector<8x128xf32>
    %c10 = arith.constant 10 : index
    %c128_55 = arith.constant 128 : index
    %62 = vector.load %arg15[%c10, %c128_55] : memref<34x256xf32, #tpu.memory_space<vmem>>, vector<8x128xf32>
    %63 = arith.addf %61, %62 : vector<8x128xf32>
    %64 = vector.broadcast %51 : vector<1x128xf32> to vector<8x128xf32>
    %65 = arith.addf %63, %64 : vector<8x128xf32>
    %cst_56 = arith.constant 2.000000e-01 : f32
    %66 = vector.broadcast %cst_56 : f32 to vector<8x128xf32>
    %67 = arith.mulf %66, %65 : vector<8x128xf32>
    %68 = arith.maximumf %65, %67 : vector<8x128xf32>
    %c8 = arith.constant 8 : index
    %c0_57 = arith.constant 0 : index
    %69 = vector.load %arg11[%c8, %c0_57] : memref<16x128xf32, #tpu.memory_space<vmem>>, vector<8x128xf32>
    tpu.vector_store %arg11[%c8, %c0_57], %68 {strides = array<i32>} : memref<16x128xf32, #tpu.memory_space<vmem>>, vector<8x128xf32>,
    %c0_58 = arith.constant 0 : index
    %c0_59 = arith.constant 0 : index
    %70 = vector.load %arg11[%c0_58, %c0_59] : memref<16x128xf32, #tpu.memory_space<vmem>>, vector<16x128xf32>
    %71 = arith.truncf %70 : vector<16x128xf32> to vector<16x128xbf16>
    %c0_60 = arith.constant 0 : index
    %c0_61 = arith.constant 0 : index
    %c0_62 = arith.constant 0 : index
    %72 = vector.load %arg5[%c0_60, %c0_61, %c0_62] : memref<2x10x16xbf16, #tpu.memory_space<vmem>>, vector<1x10x16xbf16>
    %73 = vector.shape_cast %72 : vector<1x10x16xbf16> to vector<10x16xbf16>
    %cst_63 = arith.constant dense<0.000000e+00> : vector<10x128xf32>
    %74 = tpu.matmul %73, %71, %cst_63 {dimension_numbers = #tpu.dot_dimension_numbers<[1], [0], [0], [1], [0, 0, 1, 1], [], []>} : vector<10x16xbf16>, vector<16x128xbf16>, vector<10x128xf32> -> vector<10x128xf32>
    %c1_64 = arith.constant 1 : index
    %c0_65 = arith.constant 0 : index
    %c0_66 = arith.constant 0 : index
    %75 = vector.load %arg5[%c1_64, %c0_65, %c0_66] : memref<2x10x16xbf16, #tpu.memory_space<vmem>>, vector<1x10x16xbf16>
    %76 = vector.shape_cast %75 : vector<1x10x16xbf16> to vector<10x16xbf16>
    %cst_67 = arith.constant dense<0.000000e+00> : vector<10x128xf32>
    %77 = tpu.matmul %76, %71, %cst_67 {dimension_numbers = #tpu.dot_dimension_numbers<[1], [0], [0], [1], [0, 0, 1, 1], [], []>} : vector<10x16xbf16>, vector<16x128xbf16>, vector<10x128xf32> -> vector<10x128xf32>
    %78 = arith.truncf %74 : vector<10x128xf32> to vector<10x128xbf16>
    %79 = arith.truncf %77 : vector<10x128xf32> to vector<10x128xbf16>
    %c4 = arith.constant 4 : index
    %c0_68 = arith.constant 0 : index
    %c0_69 = arith.constant 0 : index
    %80 = vector.load %arg2[%c4, %c0_68, %c0_69] : memref<8x128x256xbf16, #tpu.memory_space<vmem>>, vector<1x128x256xbf16>
    %81 = vector.shape_cast %80 : vector<1x128x256xbf16> to vector<128x256xbf16>
    %cst_70 = arith.constant dense<0.000000e+00> : vector<10x256xf32>
    %82 = tpu.matmul %78, %81, %cst_70 {dimension_numbers = #tpu.dot_dimension_numbers<[1], [0], [0], [1], [0, 0, 1, 1], [], []>} : vector<10x128xbf16>, vector<128x256xbf16>, vector<10x256xf32> -> vector<10x256xf32>
    %c5 = arith.constant 5 : index
    %c0_71 = arith.constant 0 : index
    %c0_72 = arith.constant 0 : index
    %83 = vector.load %arg2[%c5, %c0_71, %c0_72] : memref<8x128x256xbf16, #tpu.memory_space<vmem>>, vector<1x128x256xbf16>
    %84 = vector.shape_cast %83 : vector<1x128x256xbf16> to vector<128x256xbf16>
    %cst_73 = arith.constant dense<0.000000e+00> : vector<10x256xf32>
    %85 = tpu.matmul %79, %84, %cst_73 {dimension_numbers = #tpu.dot_dimension_numbers<[1], [0], [0], [1], [0, 0, 1, 1], [], []>} : vector<10x128xbf16>, vector<128x256xbf16>, vector<10x256xf32> -> vector<10x256xf32>
    %86 = arith.addf %82, %85 : vector<10x256xf32>
    %c0_74 = arith.constant 0 : index
    %c0_75 = arith.constant 0 : index
    %87 = vector.load %arg15[%c0_74, %c0_75] : memref<34x256xf32, #tpu.memory_space<vmem>>, vector<10x256xf32>
    tpu.vector_store %arg15[%c0_74, %c0_75], %86 {strides = array<i32>} : memref<34x256xf32, #tpu.memory_space<vmem>>, vector<10x256xf32>,
    %c2_76 = arith.constant 2 : index
    %c0_77 = arith.constant 0 : index
    %c0_78 = arith.constant 0 : index
    %88 = vector.load %arg3[%c2_76, %c0_77, %c0_78] : memref<4x1x128xf32, #tpu.memory_space<vmem>>, vector<1x1x128xf32>
    %89 = vector.shape_cast %88 : vector<1x1x128xf32> to vector<1x128xf32>
    %c0_79 = arith.constant 0 : index
    %c0_80 = arith.constant 0 : index
    %90 = vector.load %arg15[%c0_79, %c0_80] : memref<34x256xf32, #tpu.memory_space<vmem>>, vector<4x128xf32>
    %c1_81 = arith.constant 1 : index
    %c128_82 = arith.constant 128 : index
    %91 = vector.load %arg15[%c1_81, %c128_82] : memref<34x256xf32, #tpu.memory_space<vmem>>, vector<4x128xf32>
    %92 = arith.addf %90, %91 : vector<4x128xf32>
    %93 = vector.broadcast %89 : vector<1x128xf32> to vector<4x128xf32>
    %94 = arith.addf %92, %93 : vector<4x128xf32>
    %cst_83 = arith.constant 2.000000e-01 : f32
    %95 = vector.broadcast %cst_83 : f32 to vector<4x128xf32>
    %96 = arith.mulf %95, %94 : vector<4x128xf32>
    %97 = arith.maximumf %94, %96 : vector<4x128xf32>
    %c0_84 = arith.constant 0 : index
    %c0_85 = arith.constant 0 : index
    %98 = vector.load %arg12[%c0_84, %c0_85] : memref<8x128xf32, #tpu.memory_space<vmem>>, vector<4x128xf32>
    tpu.vector_store %arg12[%c0_84, %c0_85], %97 {strides = array<i32>} : memref<8x128xf32, #tpu.memory_space<vmem>>, vector<4x128xf32>,
    %c5_86 = arith.constant 5 : index
    %c0_87 = arith.constant 0 : index
    %99 = vector.load %arg15[%c5_86, %c0_87] : memref<34x256xf32, #tpu.memory_space<vmem>>, vector<4x128xf32>
    %c6 = arith.constant 6 : index
    %c128_88 = arith.constant 128 : index
    %100 = vector.load %arg15[%c6, %c128_88] : memref<34x256xf32, #tpu.memory_space<vmem>>, vector<4x128xf32>
    %101 = arith.addf %99, %100 : vector<4x128xf32>
    %102 = vector.broadcast %89 : vector<1x128xf32> to vector<4x128xf32>
    %103 = arith.addf %101, %102 : vector<4x128xf32>
    %cst_89 = arith.constant 2.000000e-01 : f32
    %104 = vector.broadcast %cst_89 : f32 to vector<4x128xf32>
    %105 = arith.mulf %104, %103 : vector<4x128xf32>
    %106 = arith.maximumf %103, %105 : vector<4x128xf32>
    %c4_90 = arith.constant 4 : index
    %c0_91 = arith.constant 0 : index
    %107 = vector.load %arg12[%c4_90, %c0_91] : memref<8x128xf32, #tpu.memory_space<vmem>>, vector<4x128xf32>
    tpu.vector_store %arg12[%c4_90, %c0_91], %106 {strides = array<i32>} : memref<8x128xf32, #tpu.memory_space<vmem>>, vector<4x128xf32>,
    %c0_92 = arith.constant 0 : index
    %c0_93 = arith.constant 0 : index
    %108 = vector.load %arg12[%c0_92, %c0_93] : memref<8x128xf32, #tpu.memory_space<vmem>>, vector<8x128xf32>
    %109 = arith.truncf %108 : vector<8x128xf32> to vector<8x128xbf16>
    %c0_94 = arith.constant 0 : index
    %c0_95 = arith.constant 0 : index
    %c0_96 = arith.constant 0 : index
    %110 = vector.load %arg6[%c0_94, %c0_95, %c0_96] : memref<2x6x8xbf16, #tpu.memory_space<vmem>>, vector<1x6x8xbf16>
    %111 = vector.shape_cast %110 : vector<1x6x8xbf16> to vector<6x8xbf16>
    %cst_97 = arith.constant dense<0.000000e+00> : vector<6x128xf32>
    %112 = tpu.matmul %111, %109, %cst_97 {dimension_numbers = #tpu.dot_dimension_numbers<[1], [0], [0], [1], [0, 0, 1, 1], [], []>} : vector<6x8xbf16>, vector<8x128xbf16>, vector<6x128xf32> -> vector<6x128xf32>
    %c1_98 = arith.constant 1 : index
    %c0_99 = arith.constant 0 : index
    %c0_100 = arith.constant 0 : index
    %113 = vector.load %arg6[%c1_98, %c0_99, %c0_100] : memref<2x6x8xbf16, #tpu.memory_space<vmem>>, vector<1x6x8xbf16>
    %114 = vector.shape_cast %113 : vector<1x6x8xbf16> to vector<6x8xbf16>
    %cst_101 = arith.constant dense<0.000000e+00> : vector<6x128xf32>
    %115 = tpu.matmul %114, %109, %cst_101 {dimension_numbers = #tpu.dot_dimension_numbers<[1], [0], [0], [1], [0, 0, 1, 1], [], []>} : vector<6x8xbf16>, vector<8x128xbf16>, vector<6x128xf32> -> vector<6x128xf32>
    %116 = arith.truncf %112 : vector<6x128xf32> to vector<6x128xbf16>
    %117 = arith.truncf %115 : vector<6x128xf32> to vector<6x128xbf16>
    %c6_102 = arith.constant 6 : index
    %c0_103 = arith.constant 0 : index
    %c0_104 = arith.constant 0 : index
    %118 = vector.load %arg2[%c6_102, %c0_103, %c0_104] : memref<8x128x256xbf16, #tpu.memory_space<vmem>>, vector<1x128x256xbf16>
    %119 = vector.shape_cast %118 : vector<1x128x256xbf16> to vector<128x256xbf16>
    %cst_105 = arith.constant dense<0.000000e+00> : vector<6x256xf32>
    %120 = tpu.matmul %116, %119, %cst_105 {dimension_numbers = #tpu.dot_dimension_numbers<[1], [0], [0], [1], [0, 0, 1, 1], [], []>} : vector<6x128xbf16>, vector<128x256xbf16>, vector<6x256xf32> -> vector<6x256xf32>
    %c7 = arith.constant 7 : index
    %c0_106 = arith.constant 0 : index
    %c0_107 = arith.constant 0 : index
    %121 = vector.load %arg2[%c7, %c0_106, %c0_107] : memref<8x128x256xbf16, #tpu.memory_space<vmem>>, vector<1x128x256xbf16>
    %122 = vector.shape_cast %121 : vector<1x128x256xbf16> to vector<128x256xbf16>
    %cst_108 = arith.constant dense<0.000000e+00> : vector<6x256xf32>
    %123 = tpu.matmul %117, %122, %cst_108 {dimension_numbers = #tpu.dot_dimension_numbers<[1], [0], [0], [1], [0, 0, 1, 1], [], []>} : vector<6x128xbf16>, vector<128x256xbf16>, vector<6x256xf32> -> vector<6x256xf32>
    %124 = arith.addf %120, %123 : vector<6x256xf32>
    %c0_109 = arith.constant 0 : index
    %c0_110 = arith.constant 0 : index
    %125 = vector.load %arg15[%c0_109, %c0_110] : memref<34x256xf32, #tpu.memory_space<vmem>>, vector<6x256xf32>
    tpu.vector_store %arg15[%c0_109, %c0_110], %124 {strides = array<i32>} : memref<34x256xf32, #tpu.memory_space<vmem>>, vector<6x256xf32>,
    %c3_111 = arith.constant 3 : index
    %c0_112 = arith.constant 0 : index
    %c0_113 = arith.constant 0 : index
    %126 = vector.load %arg3[%c3_111, %c0_112, %c0_113] : memref<4x1x128xf32, #tpu.memory_space<vmem>>, vector<1x1x128xf32>
    %127 = vector.shape_cast %126 : vector<1x1x128xf32> to vector<1x128xf32>
    %c0_114 = arith.constant 0 : index
    %c0_115 = arith.constant 0 : index
    %128 = vector.load %arg15[%c0_114, %c0_115] : memref<34x256xf32, #tpu.memory_space<vmem>>, vector<2x128xf32>
    %c1_116 = arith.constant 1 : index
    %c128_117 = arith.constant 128 : index
    %129 = vector.load %arg15[%c1_116, %c128_117] : memref<34x256xf32, #tpu.memory_space<vmem>>, vector<2x128xf32>
    %130 = arith.addf %128, %129 : vector<2x128xf32>
    %131 = vector.broadcast %127 : vector<1x128xf32> to vector<2x128xf32>
    %132 = arith.addf %130, %131 : vector<2x128xf32>
    %cst_118 = arith.constant 2.000000e-01 : f32
    %133 = vector.broadcast %cst_118 : f32 to vector<2x128xf32>
    %134 = arith.mulf %133, %132 : vector<2x128xf32>
    %135 = arith.maximumf %132, %134 : vector<2x128xf32>
    %c0_119 = arith.constant 0 : index
    %c0_120 = arith.constant 0 : index
    %136 = vector.load %arg13[%c0_119, %c0_120] : memref<4x128xf32, #tpu.memory_space<vmem>>, vector<2x128xf32>
    tpu.vector_store %arg13[%c0_119, %c0_120], %135 {strides = array<i32>} : memref<4x128xf32, #tpu.memory_space<vmem>>, vector<2x128xf32>,
    %c3_121 = arith.constant 3 : index
    %c0_122 = arith.constant 0 : index
    %137 = vector.load %arg15[%c3_121, %c0_122] : memref<34x256xf32, #tpu.memory_space<vmem>>, vector<2x128xf32>
    %c4_123 = arith.constant 4 : index
    %c128_124 = arith.constant 128 : index
    %138 = vector.load %arg15[%c4_123, %c128_124] : memref<34x256xf32, #tpu.memory_space<vmem>>, vector<2x128xf32>
    %139 = arith.addf %137, %138 : vector<2x128xf32>
    %140 = vector.broadcast %127 : vector<1x128xf32> to vector<2x128xf32>
    %141 = arith.addf %139, %140 : vector<2x128xf32>
    %cst_125 = arith.constant 2.000000e-01 : f32
    %142 = vector.broadcast %cst_125 : f32 to vector<2x128xf32>
    %143 = arith.mulf %142, %141 : vector<2x128xf32>
    %144 = arith.maximumf %141, %143 : vector<2x128xf32>
    %c2_126 = arith.constant 2 : index
    %c0_127 = arith.constant 0 : index
    %145 = vector.load %arg13[%c2_126, %c0_127] : memref<4x128xf32, #tpu.memory_space<vmem>>, vector<2x128xf32>
    tpu.vector_store %arg13[%c2_126, %c0_127], %144 {strides = array<i32>} : memref<4x128xf32, #tpu.memory_space<vmem>>, vector<2x128xf32>,
    %c0_128 = arith.constant 0 : index
    %c0_129 = arith.constant 0 : index
    %146 = vector.load %arg13[%c0_128, %c0_129] : memref<4x128xf32, #tpu.memory_space<vmem>>, vector<4x128xf32>
    %147 = arith.truncf %146 : vector<4x128xf32> to vector<4x128xbf16>
    %cst_130 = arith.constant 0.000000e+00 : f32
    %148 = vector.broadcast %cst_130 : f32 to vector<2x32xf32>
    %c0_131 = arith.constant 0 : index
    %c0_132 = arith.constant 0 : index
    %c0_133 = arith.constant 0 : index
    %149 = vector.load %arg7[%c0_131, %c0_132, %c0_133] : memref<2x2x4xbf16, #tpu.memory_space<vmem>>, vector<1x2x4xbf16>
    %150 = vector.shape_cast %149 : vector<1x2x4xbf16> to vector<2x4xbf16>
    %cst_134 = arith.constant dense<0.000000e+00> : vector<2x128xf32>
    %151 = tpu.matmul %150, %147, %cst_134 {dimension_numbers = #tpu.dot_dimension_numbers<[1], [0], [0], [1], [0, 0, 1, 1], [], []>} : vector<2x4xbf16>, vector<4x128xbf16>, vector<2x128xf32> -> vector<2x128xf32>
    %152 = arith.truncf %151 : vector<2x128xf32> to vector<2x128xbf16>
    %c0_135 = arith.constant 0 : index
    %c0_136 = arith.constant 0 : index
    %c0_137 = arith.constant 0 : index
    %153 = vector.load %arg8[%c0_135, %c0_136, %c0_137] : memref<2x128x32xbf16, #tpu.memory_space<vmem>>, vector<1x128x32xbf16>
    %154 = vector.shape_cast %153 : vector<1x128x32xbf16> to vector<128x32xbf16>
    %cst_138 = arith.constant dense<0.000000e+00> : vector<2x32xf32>
    %155 = tpu.matmul %152, %154, %cst_138 {dimension_numbers = #tpu.dot_dimension_numbers<[1], [0], [0], [1], [0, 0, 1, 1], [], []>} : vector<2x128xbf16>, vector<128x32xbf16>, vector<2x32xf32> -> vector<2x32xf32>
    %156 = arith.addf %148, %155 : vector<2x32xf32>
    %c1_139 = arith.constant 1 : index
    %c0_140 = arith.constant 0 : index
    %c0_141 = arith.constant 0 : index
    %157 = vector.load %arg7[%c1_139, %c0_140, %c0_141] : memref<2x2x4xbf16, #tpu.memory_space<vmem>>, vector<1x2x4xbf16>
    %158 = vector.shape_cast %157 : vector<1x2x4xbf16> to vector<2x4xbf16>
    %cst_142 = arith.constant dense<0.000000e+00> : vector<2x128xf32>
    %159 = tpu.matmul %158, %147, %cst_142 {dimension_numbers = #tpu.dot_dimension_numbers<[1], [0], [0], [1], [0, 0, 1, 1], [], []>} : vector<2x4xbf16>, vector<4x128xbf16>, vector<2x128xf32> -> vector<2x128xf32>
    %160 = arith.truncf %159 : vector<2x128xf32> to vector<2x128xbf16>
    %c1_143 = arith.constant 1 : index
    %c0_144 = arith.constant 0 : index
    %c0_145 = arith.constant 0 : index
    %161 = vector.load %arg8[%c1_143, %c0_144, %c0_145] : memref<2x128x32xbf16, #tpu.memory_space<vmem>>, vector<1x128x32xbf16>
    %162 = vector.shape_cast %161 : vector<1x128x32xbf16> to vector<128x32xbf16>
    %cst_146 = arith.constant dense<0.000000e+00> : vector<2x32xf32>
    %163 = tpu.matmul %160, %162, %cst_146 {dimension_numbers = #tpu.dot_dimension_numbers<[1], [0], [0], [1], [0, 0, 1, 1], [], []>} : vector<2x128xbf16>, vector<128x32xbf16>, vector<2x32xf32> -> vector<2x32xf32>
    %164 = arith.addf %156, %163 : vector<2x32xf32>
    %165 = vector.extract_strided_slice %164 {offsets = [0, 0], sizes = [2, 16], strides = [1, 1]} : vector<2x32xf32> to vector<2x16xf32>
    %166 = vector.extract_strided_slice %164 {offsets = [0, 16], sizes = [2, 16], strides = [1, 1]} : vector<2x32xf32> to vector<2x16xf32>
    %167 = arith.negf %166 : vector<2x16xf32>
    %168 = math.exp %167 : vector<2x16xf32>
    %cst_147 = arith.constant 1.000000e+00 : f32
    %169 = vector.broadcast %cst_147 : f32 to vector<2x16xf32>
    %170 = arith.addf %169, %168 : vector<2x16xf32>
    %171 = arith.divf %169, %170 : vector<2x16xf32>
    %172 = arith.mulf %165, %171 : vector<2x16xf32>
    %c0_148 = arith.constant 0 : index
    %c0_149 = arith.constant 0 : index
    %173 = vector.load %arg9[%c0_148, %c0_149] : memref<1x20xf32, #tpu.memory_space<vmem>>, vector<1x20xf32>
    %c0_150 = arith.constant 0 : index
    %c0_151 = arith.constant 0 : index
    %174 = vector.load %arg1[%c0_150, %c0_151] : memref<2x4xf32, #tpu.memory_space<vmem>>, vector<2x4xf32>
    %175 = vector.extract_strided_slice %173 {offsets = [0, 0], sizes = [1, 16], strides = [1, 1]} : vector<1x20xf32> to vector<1x16xf32>
    %176 = vector.broadcast %175 : vector<1x16xf32> to vector<2x16xf32>
    %177 = arith.mulf %172, %176 : vector<2x16xf32>
    %cst_152 = arith.constant dense<0.000000e+00> : vector<2xf32>
    %178 = vector.multi_reduction <add>, %177, %cst_152 [1] : vector<2x16xf32> to vector<2xf32>
    %179 = vector.shape_cast %178 : vector<2xf32> to vector<2x1xf32>
    %180 = vector.extract_strided_slice %173 {offsets = [0, 16], sizes = [1, 4], strides = [1, 1]} : vector<1x20xf32> to vector<1x4xf32>
    %181 = vector.broadcast %180 : vector<1x4xf32> to vector<2x4xf32>
    %182 = arith.mulf %174, %181 : vector<2x4xf32>
    %cst_153 = arith.constant dense<0.000000e+00> : vector<2xf32>
    %183 = vector.multi_reduction <add>, %182, %cst_153 [1] : vector<2x4xf32> to vector<2xf32>
    %184 = vector.shape_cast %183 : vector<2xf32> to vector<2x1xf32>
    %185 = arith.addf %179, %184 : vector<2x1xf32>
    %c0_154 = arith.constant 0 : index
    %c0_155 = arith.constant 0 : index
    %186 = vector.load %arg14[%c0_154, %c0_155] : memref<2x1xf32, #tpu.memory_space<vmem>>, vector<2x1xf32>
    tpu.vector_store %arg14[%c0_154, %c0_155], %185 {strides = array<i32>} : memref<2x1xf32, #tpu.memory_space<vmem>>, vector<2x1xf32>,
    return
  }
}

</mosaic_0001>

<llo_original>
// kernel: _lambda_.1
$region0: #{_lambda_.1}
  #allocation0 [shape = 'u32[]', space=smem, size = 0x4, offset = 0x4, fixed_abs, tag = 'smem constant byte address 0x4 - core index']
  #allocation1 [shape = 'u32[144,128]{1,0:T(1,128)}', space=vmem, size = 0x12000, scoped, tag = 'internal scratch']
  #allocation2 [shape = 'f32[34,256]{1,0:T(8,128)}', space=vmem, size = 0xa000, scoped, tag = 'scratch operand']
  %s0 = inlined_call_operand.vmem [shape: bf16[2,34,128], index: 0, kind: input, shape index: {}]
  %s1 = inlined_call_operand.vmem [shape: f32[2,4], index: 1, kind: input, shape index: {}]
  %s2 = inlined_call_operand.vmem [shape: bf16[8,128,256], index: 2, kind: input, shape index: {}]
  %s3 = inlined_call_operand.vmem [shape: f32[4,1,128], index: 3, kind: input, shape index: {}]
  %s4 = inlined_call_operand.vmem [shape: bf16[2,18,32], index: 4, kind: input, shape index: {}]
  %s5 = inlined_call_operand.vmem [shape: bf16[2,10,16], index: 5, kind: input, shape index: {}]
  %s6 = inlined_call_operand.vmem [shape: bf16[2,6,8], index: 6, kind: input, shape index: {}]
  %s7 = inlined_call_operand.vmem [shape: bf16[2,2,4], index: 7, kind: input, shape index: {}]
  %s8 = inlined_call_operand.vmem [shape: bf16[2,128,32], index: 8, kind: input, shape index: {}]
  %s9 = inlined_call_operand.vmem [shape: f32[1,20], index: 9, kind: input, shape index: {}]
  %s10 = inlined_call_operand.vmem [shape: f32[32,128], index: 10, kind: output, shape index: {0}]
  %s11 = inlined_call_operand.vmem [shape: f32[16,128], index: 11, kind: output, shape index: {1}]
  %s12 = inlined_call_operand.vmem [shape: f32[8,128], index: 12, kind: output, shape index: {2}]
  %s13 = inlined_call_operand.vmem [shape: f32[4,128], index: 13, kind: output, shape index: {3}]
  %s14 = inlined_call_operand.vmem [shape: f32[2,1], index: 14, kind: output, shape index: {4}]
  %15 = xla_tuple %s10, %s11, %s12, %s13, %s14
  %s16 = sld [smem:[#allocation0]]
  $region82: #{_lambda_.1} parent=0
    _
  %s18 = ssub.s32 1, %s16
  %s19 = scalar_select 0, %s18, %s16
  // Predicated region
  $region2: #{_lambda_.1} parent=0 // pred_check
    _
  $region3: #{_lambda_.1} parent=0 // pred_check_branch
    %21 = sbr.rel (0) target = $region5
  $region4: #{_lambda_.1} parent=0 // pred_region
    _
  $region5: #{_lambda_.1} parent=0 // pred_fallthru
    _
  // Predicated region
  $region6: #{_lambda_.1} parent=0 // pred_check
    _
  $region7: #{_lambda_.1} parent=0 // pred_check_branch
    %23 = sbr.rel (0) target = $region9
  $region8: #{_lambda_.1} parent=0 // pred_region
    _
  $region9: #{_lambda_.1} parent=0 // pred_fallthru
    _
  // Predicated region
  $region10: #{_lambda_.1} parent=0 // pred_check
    _
  $region11: #{_lambda_.1} parent=0 // pred_check_branch
    %25 = sbr.rel (0) target = $region13
  $region12: #{_lambda_.1} parent=0 // pred_region
    _
  $region13: #{_lambda_.1} parent=0 // pred_fallthru
    _
  // Predicated region
  $region14: #{_lambda_.1} parent=0 // pred_check
    _
  $region15: #{_lambda_.1} parent=0 // pred_check_branch
    %27 = sbr.rel (0) target = $region17
  $region16: #{_lambda_.1} parent=0 // pred_region
    _
  $region17: #{_lambda_.1} parent=0 // pred_fallthru
    _
  // Predicated region
  $region18: #{_lambda_.1} parent=0 // pred_check
    _
  $region19: #{_lambda_.1} parent=0 // pred_check_branch
    %29 = sbr.rel (0) target = $region21
  $region20: #{_lambda_.1} parent=0 // pred_region
    _
  $region21: #{_lambda_.1} parent=0 // pred_fallthru
    _
  // Predicated region
  $region22: #{_lambda_.1} parent=0 // pred_check
    _
  $region23: #{_lambda_.1} parent=0 // pred_check_branch
    %31 = sbr.rel (0) target = $region25
  $region24: #{_lambda_.1} parent=0 // pred_region
    _
  $region25: #{_lambda_.1} parent=0 // pred_fallthru
    _
  // Predicated region
  $region26: #{_lambda_.1} parent=0 // pred_check
    _
  $region27: #{_lambda_.1} parent=0 // pred_check_branch
    %33 = sbr.rel (0) target = $region29
  $region28: #{_lambda_.1} parent=0 // pred_region
    _
  $region29: #{_lambda_.1} parent=0 // pred_fallthru
    _
  // Predicated region
  $region30: #{_lambda_.1} parent=0 // pred_check
    _
  $region31: #{_lambda_.1} parent=0 // pred_check_branch
    %35 = sbr.rel (0) target = $region33
  $region32: #{_lambda_.1} parent=0 // pred_region
    _
  $region33: #{_lambda_.1} parent=0 // pred_fallthru
    _
  // Predicated region
  $region34: #{_lambda_.1} parent=0 // pred_check
    _
  $region35: #{_lambda_.1} parent=0 // pred_check_branch
    %37 = sbr.rel (0) target = $region37
  $region36: #{_lambda_.1} parent=0 // pred_region
    _
  $region37: #{_lambda_.1} parent=0 // pred_fallthru
    _
  // Predicated region
  $region38: #{_lambda_.1} parent=0 // pred_check
    _
  $region39: #{_lambda_.1} parent=0 // pred_check_branch
    %39 = sbr.rel (0) target = $region41
  $region40: #{_lambda_.1} parent=0 // pred_region
    _
  $region41: #{_lambda_.1} parent=0 // pred_fallthru
    _
  %v41 = vld [vmem:[%s0] sm:$0xf]
  %v42 = vld [vmem:[%s0 + $0x4] sm:$0xf]
  %v43 = vld [vmem:[%s0 + $0x8] sm:$0xf]
  %v44 = vld [vmem:[%s0 + $0xc] sm:$0xf]
  %v45 = vld [vmem:[%s0 + $0x10] sm:$0x1]
  %s46 = scalar_lea.vmem %s0, 20
  %v47 = vld [vmem:[%s46] sm:$0xf]
  %v48 = vld [vmem:[%s46 + $0x4] sm:$0xf]
  %v49 = vld [vmem:[%s46 + $0x8] sm:$0xf]
  %v50 = vld [vmem:[%s46 + $0xc] sm:$0xf]
  %v51 = vld [vmem:[%s46 + $0x10] sm:$0x1]
  %v52 = vld [vmem:[%s2] sm:$0xff]
  %v53 = vld [vmem:[%s2 + $0x8] sm:$0xff]
  %v54 = vld [vmem:[%s2 + $0x10] sm:$0xff]
  %v55 = vld [vmem:[%s2 + $0x18] sm:$0xff]
  %v56 = vld [vmem:[%s2 + $0x20] sm:$0xff]
  %v57 = vld [vmem:[%s2 + $0x28] sm:$0xff]
  %v58 = vld [vmem:[%s2 + $0x30] sm:$0xff]
  %v59 = vld [vmem:[%s2 + $0x38] sm:$0xff]
  %v60 = vld [vmem:[%s2 + $0x40] sm:$0xff]
  %v61 = vld [vmem:[%s2 + $0x48] sm:$0xff]
  %v62 = vld [vmem:[%s2 + $0x50] sm:$0xff]
  %v63 = vld [vmem:[%s2 + $0x58] sm:$0xff]
  %v64 = vld [vmem:[%s2 + $0x60] sm:$0xff]
  %v65 = vld [vmem:[%s2 + $0x68] sm:$0xff]
  %v66 = vld [vmem:[%s2 + $0x70] sm:$0xff]
  %v67 = vld [vmem:[%s2 + $0x78] sm:$0xff]
  %s68 = scalar_lea.vmem %s2, 128
  %v69 = vld [vmem:[%s68] sm:$0xff]
  %v70 = vld [vmem:[%s68 + $0x8] sm:$0xff]
  %v71 = vld [vmem:[%s68 + $0x10] sm:$0xff]
  %v72 = vld [vmem:[%s68 + $0x18] sm:$0xff]
  %v73 = vld [vmem:[%s68 + $0x20] sm:$0xff]
  %v74 = vld [vmem:[%s68 + $0x28] sm:$0xff]
  %v75 = vld [vmem:[%s68 + $0x30] sm:$0xff]
  %v76 = vld [vmem:[%s68 + $0x38] sm:$0xff]
  %v77 = vld [vmem:[%s68 + $0x40] sm:$0xff]
  %v78 = vld [vmem:[%s68 + $0x48] sm:$0xff]
  %v79 = vld [vmem:[%s68 + $0x50] sm:$0xff]
  %v80 = vld [vmem:[%s68 + $0x58] sm:$0xff]
  %v81 = vld [vmem:[%s68 + $0x60] sm:$0xff]
  %v82 = vld [vmem:[%s68 + $0x68] sm:$0xff]
  %v83 = vld [vmem:[%s68 + $0x70] sm:$0xff]
  %v84 = vld [vmem:[%s68 + $0x78] sm:$0xff]
  %v90 = vunpack.c.l.b16 %v47
  %v91 = vunpack.c.l.b16 %v48
  %v92 = vunpack.c.l.b16 %v49
  %v93 = vunpack.c.l.b16 %v50
  %v94 = vunpack.c.l.b16 %v51
  %v95 = vpack.c.b16 %v91, %v90
  %v96 = vpack.c.b16 %v93, %v92
  %v97 = vpack.c.b16 %v94, %v94
  %v117 = vunpack.c.l.b16 %v69
  %v118 = vunpack.c.h.b16 %v69
  %v119 = vunpack.c.l.b16 %v70
  %v120 = vunpack.c.h.b16 %v70
  %v121 = vunpack.c.l.b16 %v71
  %v122 = vunpack.c.h.b16 %v71
  %v123 = vunpack.c.l.b16 %v72
  %v124 = vunpack.c.h.b16 %v72
  %v125 = vunpack.c.l.b16 %v73
  %v126 = vunpack.c.h.b16 %v73
  %v127 = vunpack.c.l.b16 %v74
  %v128 = vunpack.c.h.b16 %v74
  %v129 = vunpack.c.l.b16 %v75
  %v130 = vunpack.c.h.b16 %v75
  %v131 = vunpack.c.l.b16 %v76
  %v132 = vunpack.c.h.b16 %v76
  %v133 = vunpack.c.l.b16 %v77
  %v134 = vunpack.c.h.b16 %v77
  %v135 = vunpack.c.l.b16 %v78
  %v136 = vunpack.c.h.b16 %v78
  %v137 = vunpack.c.l.b16 %v79
  %v138 = vunpack.c.h.b16 %v79
  %v139 = vunpack.c.l.b16 %v80
  %v140 = vunpack.c.h.b16 %v80
  %v141 = vunpack.c.l.b16 %v81
  %v142 = vunpack.c.h.b16 %v81
  %v143 = vunpack.c.l.b16 %v82
  %v144 = vunpack.c.h.b16 %v82
  %v145 = vunpack.c.l.b16 %v83
  %v146 = vunpack.c.h.b16 %v83
  %v147 = vunpack.c.l.b16 %v84
  %v148 = vunpack.c.h.b16 %v84
  %v149 = vpack.c.b16 %v119, %v117
  %v150 = vpack.c.b16 %v120, %v118
  %v151 = vpack.c.b16 %v123, %v121
  %v152 = vpack.c.b16 %v124, %v122
  %v153 = vpack.c.b16 %v127, %v125
  %v154 = vpack.c.b16 %v128, %v126
  %v155 = vpack.c.b16 %v131, %v129
  %v156 = vpack.c.b16 %v132, %v130
  %v157 = vpack.c.b16 %v135, %v133
  %v158 = vpack.c.b16 %v136, %v134
  %v159 = vpack.c.b16 %v139, %v137
  %v160 = vpack.c.b16 %v140, %v138
  %v161 = vpack.c.b16 %v143, %v141
  %v162 = vpack.c.b16 %v144, %v142
  %v163 = vpack.c.b16 %v147, %v145
  %v164 = vpack.c.b16 %v148, %v146
  %181 = vmatprep.subr.bf16.mxu0 %v150
  %182 = vmatpush1.bf16.msra.mxu0 %v149
  %183 = vmatprep.subr.bf16.mxu0 %v152
  %184 = vmatpush1.bf16.msra.mxu0 %v151
  %185 = vmatprep.subr.bf16.mxu0 %v154
  %186 = vmatpush1.bf16.msra.mxu0 %v153
  %187 = vmatprep.subr.bf16.mxu0 %v156
  %188 = vmatpush1.bf16.msra.mxu0 %v155
  %189 = vmatprep.subr.bf16.mxu0 %v158
  %190 = vmatpush1.bf16.msra.mxu0 %v157
  %191 = vmatprep.subr.bf16.mxu0 %v160
  %192 = vmatpush1.bf16.msra.mxu0 %v159
  %193 = vmatprep.subr.bf16.mxu0 %v162
  %194 = vmatpush1.bf16.msra.mxu0 %v161
  %195 = vmatprep.subr.bf16.mxu0 %v164
  %196 = vmatpush1.bf16.msra.mxu0 %v163
  %197 = vmatprep.subr.bf16.mxu0 0
  %198 = vmatpush1.bf16.msra.mxu0 0
  %199 = vmatprep.subr.bf16.mxu0 0
  %200 = vmatpush1.bf16.msra.mxu0 0
  %201 = vmatprep.subr.bf16.mxu0 0
  %202 = vmatpush1.bf16.msra.mxu0 0
  %203 = vmatprep.subr.bf16.mxu0 0
  %204 = vmatpush1.bf16.msra.mxu0 0
  %205 = vmatprep.subr.bf16.mxu0 0
  %206 = vmatpush1.bf16.msra.mxu0 0
  %207 = vmatprep.subr.bf16.mxu0 0
  %208 = vmatpush1.bf16.msra.mxu0 0
  %209 = vmatprep.subr.bf16.mxu0 0
  %210 = vmatpush1.bf16.msra.mxu0 0
  %211 = vmatprep.subr.bf16.mxu0 0
  %212 = vmatpush1.bf16.msra.mxu0 0
  %213 = vmatprep.mubr.bf16.mxu0 0
  %214 = vmatmul.mubr.bf16.gmra.mrb[0].mxu0 %v95
  %v215 = vpop.f32.mrb[0].mxu0
  %v216 = vadd.f32 0.0, %v215
  %v217 = vpop.f32.mrb[0].mxu0
  %v218 = vadd.f32 0.0, %v217
  %v219 = vpop.f32.mrb[0].mxu0
  %v220 = vadd.f32 0.0, %v219
  %v221 = vpop.f32.mrb[0].mxu0
  %v222 = vadd.f32 0.0, %v221
  %223 = vmatprep.mubr.bf16.mxu0 0
  %224 = vmatmul.mubr.bf16.gmra.mrb[0].mxu0 %v96
  %v225 = vpop.f32.mrb[0].mxu0
  %v226 = vadd.f32 0.0, %v225
  %v227 = vpop.f32.mrb[0].mxu0
  %v228 = vadd.f32 0.0, %v227
  %v229 = vpop.f32.mrb[0].mxu0
  %v230 = vadd.f32 0.0, %v229
  %v231 = vpop.f32.mrb[0].mxu0
  %v232 = vadd.f32 0.0, %v231
  %233 = vmatprep.mubr.bf16.mxu0 0
  %234 = vmatmul.mubr.bf16.gmra.mrb[0].mxu0 %v97
  %v235 = vpop.f32.mrb[0].mxu0
  %v236 = vadd.f32 0.0, %v235
  %v237 = vpop.f32.mrb[0].mxu0
  %v238 = vadd.f32 0.0, %v237
  %v239 = vpop.f32.mrb[0].mxu0
  %v240 = vpop.f32.mrb[0].mxu0
  %241 = vdwg.mxu0
  %v247 = vunpack.c.l.b16 %v41
  %v248 = vunpack.c.l.b16 %v42
  %v249 = vunpack.c.l.b16 %v43
  %v250 = vunpack.c.l.b16 %v44
  %v251 = vunpack.c.l.b16 %v45
  %v252 = vpack.c.b16 %v248, %v247
  %v253 = vpack.c.b16 %v250, %v249
  %v254 = vpack.c.b16 %v251, %v251
  %v274 = vunpack.c.l.b16 %v52
  %v275 = vunpack.c.h.b16 %v52
  %v276 = vunpack.c.l.b16 %v53
  %v277 = vunpack.c.h.b16 %v53
  %v278 = vunpack.c.l.b16 %v54
  %v279 = vunpack.c.h.b16 %v54
  %v280 = vunpack.c.l.b16 %v55
  %v281 = vunpack.c.h.b16 %v55
  %v282 = vunpack.c.l.b16 %v56
  %v283 = vunpack.c.h.b16 %v56
  %v284 = vunpack.c.l.b16 %v57
  %v285 = vunpack.c.h.b16 %v57
  %v286 = vunpack.c.l.b16 %v58
  %v287 = vunpack.c.h.b16 %v58
  %v288 = vunpack.c.l.b16 %v59
  %v289 = vunpack.c.h.b16 %v59
  %v290 = vunpack.c.l.b16 %v60
  %v291 = vunpack.c.h.b16 %v60
  %v292 = vunpack.c.l.b16 %v61
  %v293 = vunpack.c.h.b16 %v61
  %v294 = vunpack.c.l.b16 %v62
  %v295 = vunpack.c.h.b16 %v62
  %v296 = vunpack.c.l.b16 %v63
  %v297 = vunpack.c.h.b16 %v63
  %v298 = vunpack.c.l.b16 %v64
  %v299 = vunpack.c.h.b16 %v64
  %v300 = vunpack.c.l.b16 %v65
  %v301 = vunpack.c.h.b16 %v65
  %v302 = vunpack.c.l.b16 %v66
  %v303 = vunpack.c.h.b16 %v66
  %v304 = vunpack.c.l.b16 %v67
  %v305 = vunpack.c.h.b16 %v67
  %v306 = vpack.c.b16 %v276, %v274
  %v307 = vpack.c.b16 %v277, %v275
  %v308 = vpack.c.b16 %v280, %v278
  %v309 = vpack.c.b16 %v281, %v279
  %v310 = vpack.c.b16 %v284, %v282
  %v311 = vpack.c.b16 %v285, %v283
  %v312 = vpack.c.b16 %v288, %v286
  %v313 = vpack.c.b16 %v289, %v287
  %v314 = vpack.c.b16 %v292, %v290
  %v315 = vpack.c.b16 %v293, %v291
  %v316 = vpack.c.b16 %v296, %v294
  %v317 = vpack.c.b16 %v297, %v295
  %v318 = vpack.c.b16 %v300, %v298
  %v319 = vpack.c.b16 %v301, %v299
  %v320 = vpack.c.b16 %v304, %v302
  %v321 = vpack.c.b16 %v305, %v303
  %338 = vmatprep.subr.bf16.mxu0 %v307
  %339 = vmatpush1.bf16.msra.mxu0 %v306
  %340 = vmatprep.subr.bf16.mxu0 %v309
  %341 = vmatpush1.bf16.msra.mxu0 %v308
  %342 = vmatprep.subr.bf16.mxu0 %v311
  %343 = vmatpush1.bf16.msra.mxu0 %v310
  %344 = vmatprep.subr.bf16.mxu0 %v313
  %345 = vmatpush1.bf16.msra.mxu0 %v312
  %346 = vmatprep.subr.bf16.mxu0 %v315
  %347 = vmatpush1.bf16.msra.mxu0 %v314
  %348 = vmatprep.subr.bf16.mxu0 %v317
  %349 = vmatpush1.bf16.msra.mxu0 %v316
  %350 = vmatprep.subr.bf16.mxu0 %v319
  %351 = vmatpush1.bf16.msra.mxu0 %v318
  %352 = vmatprep.subr.bf16.mxu0 %v321
  %353 = vmatpush1.bf16.msra.mxu0 %v320
  %354 = vmatprep.subr.bf16.mxu0 0
  %355 = vmatpush1.bf16.msra.mxu0 0
  %356 = vmatprep.subr.bf16.mxu0 0
  %357 = vmatpush1.bf16.msra.mxu0 0
  %358 = vmatprep.subr.bf16.mxu0 0
  %359 = vmatpush1.bf16.msra.mxu0 0
  %360 = vmatprep.subr.bf16.mxu0 0
  %361 = vmatpush1.bf16.msra.mxu0 0
  %362 = vmatprep.subr.bf16.mxu0 0
  %363 = vmatpush1.bf16.msra.mxu0 0
  %364 = vmatprep.subr.bf16.mxu0 0
  %365 = vmatpush1.bf16.msra.mxu0 0
  %366 = vmatprep.subr.bf16.mxu0 0
  %367 = vmatpush1.bf16.msra.mxu0 0
  %368 = vmatprep.subr.bf16.mxu0 0
  %369 = vmatpush1.bf16.msra.mxu0 0
  %370 = vmatprep.mubr.bf16.mxu0 0
  %371 = vmatmul.mubr.bf16.gmra.mrb[0].mxu0 %v252
  %v372 = vpop.f32.mrb[0].mxu0
  %v373 = vadd.f32 %v216, %v372
  %v374 = vpop.f32.mrb[0].mxu0
  %v375 = vadd.f32 %v218, %v374
  %v376 = vpop.f32.mrb[0].mxu0
  %v377 = vadd.f32 %v220, %v376
  %v378 = vpop.f32.mrb[0].mxu0
  %v379 = vadd.f32 %v222, %v378
  %380 = vmatprep.mubr.bf16.mxu0 0
  %381 = vmatmul.mubr.bf16.gmra.mrb[0].mxu0 %v253
  %v382 = vpop.f32.mrb[0].mxu0
  %v383 = vadd.f32 %v226, %v382
  %v384 = vpop.f32.mrb[0].mxu0
  %v385 = vadd.f32 %v228, %v384
  %v386 = vpop.f32.mrb[0].mxu0
  %v387 = vadd.f32 %v230, %v386
  %v388 = vpop.f32.mrb[0].mxu0
  %v389 = vadd.f32 %v232, %v388
  %390 = vmatprep.mubr.bf16.mxu0 0
  %391 = vmatmul.mubr.bf16.gmra.mrb[0].mxu0 %v254
  %v392 = vpop.f32.mrb[0].mxu0
  %v393 = vadd.f32 %v236, %v392
  %v394 = vpop.f32.mrb[0].mxu0
  %v395 = vadd.f32 %v238, %v394
  %v396 = vpop.f32.mrb[0].mxu0
  %v397 = vpop.f32.mrb[0].mxu0
  %398 = vdwg.mxu0
  %399 = vst [vmem:[#allocation2] sm:$0xff] %v373
  %400 = vst [vmem:[#allocation2 + $0x8] sm:$0xff] %v375
  %401 = vst [vmem:[#allocation2 + $0x10] sm:$0xff] %v377
  %402 = vst [vmem:[#allocation2 + $0x18] sm:$0xff] %v379
  %403 = vst [vmem:[#allocation2 + $0x20] sm:$0xff] %v383
  %404 = vst [vmem:[#allocation2 + $0x28] sm:$0xff] %v385
  %405 = vst [vmem:[#allocation2 + $0x30] sm:$0xff] %v387
  %406 = vst [vmem:[#allocation2 + $0x38] sm:$0xff] %v389
  %407 = vst [vmem:[#allocation2 + $0x40] sm:$0x3] %v393
  %408 = vst [vmem:[#allocation2 + $0x48] sm:$0x3] %v395
  %v409 = vld [vmem:[%s3] sm:$0x1]
  %v410 = vld [vmem:[#allocation2] sm:$0xff]
  %v411 = vld [vmem:[#allocation2 + $0x10] sm:$0xff]
  %v412 = vld [vmem:[#allocation2 + $0x8] sm:$0xfe]
  %v413 = vld [vmem:[#allocation2 + $0x18] sm:$0xff]
  %v414 = vld [vmem:[#allocation2 + $0x28] sm:$0x1]
  %vm418 = vcmask 1046528
  %v419 = vrot.slane %v412, 1
  %v420 = vrot.slane %v413, 1
  %v421 = vsel %vm418, %v419, %v420
  %v422 = vrot.slane %v414, 1
  %v423 = vsel %vm418, %v420, %v422
  %v426 = vadd.f32 %v410, %v421
  %v427 = vadd.f32 %v411, %v423
  %v429 = vlaneseq
  %v430 = vshrl.u32 %v429, 7
  %v431 = vsub.s32 0, %v430
  %v432 = vrot.slane %v409, %v431
  %v434 = vadd.f32 %v426, %v432
  %v435 = vadd.f32 %v427, %v432
  %v436 = vmul.f32 %v434, 0.2
  %v437 = vmul.f32 %v435, 0.2
  %v438 = vmax.f32 %v434, %v436
  %v439 = vmax.f32 %v435, %v437
  %440 = vst [vmem:[%s10] sm:$0xff] %v438
  %441 = vst [vmem:[%s10 + $0x8] sm:$0xff] %v439
  %v442 = vld [vmem:[#allocation2 + $0x20] sm:$0xfe]
  %v443 = vld [vmem:[#allocation2 + $0x30] sm:$0xff]
  %v444 = vld [vmem:[#allocation2 + $0x40] sm:$0x1]
  %v445 = vld [vmem:[#allocation2 + $0x28] sm:$0xfc]
  %v446 = vld [vmem:[#allocation2 + $0x38] sm:$0xff]
  %v447 = vld [vmem:[#allocation2 + $0x48] sm:$0x3]
  %v451 = vrot.slane %v445, 1
  %v452 = vrot.slane %v446, 1
  %v453 = vsel %vm418, %v451, %v452
  %v454 = vrot.slane %v447, 1
  %v455 = vsel %vm418, %v452, %v454
  %v459 = vadd.f32 %v442, %v453
  %v460 = vadd.f32 %v443, %v455
  %v461 = vadd.f32 %v444, %v454
  %v462 = vadd.f32 %v459, %v432
  %v463 = vadd.f32 %v460, %v432
  %v464 = vadd.f32 %v461, %v432
  %v465 = vmul.f32 %v462, 0.2
  %v466 = vmul.f32 %v463, 0.2
  %v467 = vmul.f32 %v464, 0.2
  %v468 = vmax.f32 %v462, %v465
  %v469 = vmax.f32 %v463, %v466
  %v470 = vmax.f32 %v464, %v467
  %471 = vst [vmem:[%s10 + $0xf] sm:$0xfe] %v468
  %472 = vst [vmem:[%s10 + $0x17] sm:$0xff] %v469
  %473 = vst [vmem:[%s10 + $0x1f] sm:$0x1] %v470
  %v474 = vld [vmem:[%s10] sm:$0xff]
  %v475 = vld [vmem:[%s10 + $0x8] sm:$0xff]
  %v476 = vld [vmem:[%s10 + $0x10] sm:$0xff]
  %v477 = vld [vmem:[%s10 + $0x18] sm:$0xff]
  %v478 = vpack.c.bf16 %v475, %v474
  %v479 = vpack.c.bf16 %v477, %v476
  %v480 = vld [vmem:[%s4] sm:$0xf]
  %v481 = vld [vmem:[%s4 + $0x4] sm:$0xf]
  %v482 = vld [vmem:[%s4 + $0x8] sm:$0x1]
  %v486 = vunpack.c.l.b16 %v480
  %v487 = vunpack.c.l.b16 %v481
  %v488 = vunpack.c.l.b16 %v482
  %v489 = vpack.c.b16 %v487, %v486
  %v490 = vpack.c.b16 %v488, %v488
  %vm491 = vcmask 261120
  %v493 = vsel %vm491, %v489, 0
  %v496 = vsel %vm491, %v490, 0
  %498 = vmatprep.subr.bf16.mxu0 0
  %499 = vmatpush1.bf16.msra.mxu0 %v478
  %500 = vmatprep.subr.bf16.mxu0 0
  %501 = vmatpush1.bf16.msra.mxu0 %v479
  %502 = vmatprep.subr.bf16.mxu0 0
  %503 = vmatpush1.bf16.msra.mxu0 0
  %504 = vmatprep.subr.bf16.mxu0 0
  %505 = vmatpush1.bf16.msra.mxu0 0
  %506 = vmatprep.subr.bf16.mxu0 0
  %507 = vmatpush1.bf16.msra.mxu0 0
  %508 = vmatprep.subr.bf16.mxu0 0
  %509 = vmatpush1.bf16.msra.mxu0 0
  %510 = vmatprep.subr.bf16.mxu0 0
  %511 = vmatpush1.bf16.msra.mxu0 0
  %512 = vmatprep.subr.bf16.mxu0 0
  %513 = vmatpush1.bf16.msra.mxu0 0
  %514 = vmatprep.subr.bf16.mxu0 0
  %515 = vmatpush1.bf16.msra.mxu0 0
  %516 = vmatprep.subr.bf16.mxu0 0
  %517 = vmatpush1.bf16.msra.mxu0 0
  %518 = vmatprep.subr.bf16.mxu0 0
  %519 = vmatpush1.bf16.msra.mxu0 0
  %520 = vmatprep.subr.bf16.mxu0 0
  %521 = vmatpush1.bf16.msra.mxu0 0
  %522 = vmatprep.subr.bf16.mxu0 0
  %523 = vmatpush1.bf16.msra.mxu0 0
  %524 = vmatprep.subr.bf16.mxu0 0
  %525 = vmatpush1.bf16.msra.mxu0 0
  %526 = vmatprep.subr.bf16.mxu0 0
  %527 = vmatpush1.bf16.msra.mxu0 0
  %528 = vmatprep.subr.bf16.mxu0 0
  %529 = vmatpush1.bf16.msra.mxu0 0
  %530 = vmatprep.mubr.bf16.mxu0 0
  %531 = vmatmul.mubr.bf16.gmra.mrb[0].mxu0 %v493
  %v532 = vpop.f32.mrb[0].mxu0
  %v533 = vadd.f32 0.0, %v532
  %v534 = vpop.f32.mrb[0].mxu0
  %v535 = vpop.f32.mrb[0].mxu0
  %v536 = vadd.f32 0.0, %v535
  %v537 = vpop.f32.mrb[0].mxu0
  %538 = vmatprep.mubr.bf16.mxu0 0
  %539 = vmatmul.mubr.bf16.gmra.mrb[0].mxu0 %v496
  %v540 = vpop.f32.mrb[0].mxu0
  %v541 = vadd.f32 0.0, %v540
  %v542 = vpop.f32.mrb[0].mxu0
  %v543 = vpop.f32.mrb[0].mxu0
  %v544 = vpop.f32.mrb[0].mxu0
  %545 = vdwg.mxu0
  %s546 = scalar_lea.vmem %s4, 12
  %v547 = vld [vmem:[%s546] sm:$0xf]
  %v548 = vld [vmem:[%s546 + $0x4] sm:$0xf]
  %v549 = vld [vmem:[%s546 + $0x8] sm:$0x1]
  %v553 = vunpack.c.l.b16 %v547
  %v554 = vunpack.c.l.b16 %v548
  %v555 = vunpack.c.l.b16 %v549
  %v556 = vpack.c.b16 %v554, %v553
  %v557 = vpack.c.b16 %v555, %v555
  %v559 = vsel %vm491, %v556, 0
  %v562 = vsel %vm491, %v557, 0
  %564 = vmatprep.subr.bf16.mxu0 0
  %565 = vmatpush1.bf16.msra.mxu0 %v478
  %566 = vmatprep.subr.bf16.mxu0 0
  %567 = vmatpush1.bf16.msra.mxu0 %v479
  %568 = vmatprep.subr.bf16.mxu0 0
  %569 = vmatpush1.bf16.msra.mxu0 0
  %570 = vmatprep.subr.bf16.mxu0 0
  %571 = vmatpush1.bf16.msra.mxu0 0
  %572 = vmatprep.subr.bf16.mxu0 0
  %573 = vmatpush1.bf16.msra.mxu0 0
  %574 = vmatprep.subr.bf16.mxu0 0
  %575 = vmatpush1.bf16.msra.mxu0 0
  %576 = vmatprep.subr.bf16.mxu0 0
  %577 = vmatpush1.bf16.msra.mxu0 0
  %578 = vmatprep.subr.bf16.mxu0 0
  %579 = vmatpush1.bf16.msra.mxu0 0
  %580 = vmatprep.subr.bf16.mxu0 0
  %581 = vmatpush1.bf16.msra.mxu0 0
  %582 = vmatprep.subr.bf16.mxu0 0
  %583 = vmatpush1.bf16.msra.mxu0 0
  %584 = vmatprep.subr.bf16.mxu0 0
  %585 = vmatpush1.bf16.msra.mxu0 0
  %586 = vmatprep.subr.bf16.mxu0 0
  %587 = vmatpush1.bf16.msra.mxu0 0
  %588 = vmatprep.subr.bf16.mxu0 0
  %589 = vmatpush1.bf16.msra.mxu0 0
  %590 = vmatprep.subr.bf16.mxu0 0
  %591 = vmatpush1.bf16.msra.mxu0 0
  %592 = vmatprep.subr.bf16.mxu0 0
  %593 = vmatpush1.bf16.msra.mxu0 0
  %594 = vmatprep.subr.bf16.mxu0 0
  %595 = vmatpush1.bf16.msra.mxu0 0
  %596 = vmatprep.mubr.bf16.mxu0 0
  %597 = vmatmul.mubr.bf16.gmra.mrb[0].mxu0 %v559
  %v598 = vpop.f32.mrb[0].mxu0
  %v599 = vadd.f32 0.0, %v598
  %v600 = vpop.f32.mrb[0].mxu0
  %v601 = vpop.f32.mrb[0].mxu0
  %v602 = vadd.f32 0.0, %v601
  %v603 = vpop.f32.mrb[0].mxu0
  %604 = vmatprep.mubr.bf16.mxu0 0
  %605 = vmatmul.mubr.bf16.gmra.mrb[0].mxu0 %v562
  %v606 = vpop.f32.mrb[0].mxu0
  %v607 = vadd.f32 0.0, %v606
  %v608 = vpop.f32.mrb[0].mxu0
  %v609 = vpop.f32.mrb[0].mxu0
  %v610 = vpop.f32.mrb[0].mxu0
  %611 = vdwg.mxu0
  %v612 = vpack.c.bf16 %v536, %v533
  %v613 = vpack.c.bf16 %v541, %v541
  %v614 = vpack.c.bf16 %v602, %v599
  %v615 = vpack.c.bf16 %v607, %v607
  %s616 = scalar_lea.vmem %s2, 256
  %v617 = vld [vmem:[%s616] sm:$0xff]
  %v618 = vld [vmem:[%s616 + $0x8] sm:$0xff]
  %v619 = vld [vmem:[%s616 + $0x10] sm:$0xff]
  %v620 = vld [vmem:[%s616 + $0x18] sm:$0xff]
  %v621 = vld [vmem:[%s616 + $0x20] sm:$0xff]
  %v622 = vld [vmem:[%s616 + $0x28] sm:$0xff]
  %v623 = vld [vmem:[%s616 + $0x30] sm:$0xff]
  %v624 = vld [vmem:[%s616 + $0x38] sm:$0xff]
  %v625 = vld [vmem:[%s616 + $0x40] sm:$0xff]
  %v626 = vld [vmem:[%s616 + $0x48] sm:$0xff]
  %v627 = vld [vmem:[%s616 + $0x50] sm:$0xff]
  %v628 = vld [vmem:[%s616 + $0x58] sm:$0xff]
  %v629 = vld [vmem:[%s616 + $0x60] sm:$0xff]
  %v630 = vld [vmem:[%s616 + $0x68] sm:$0xff]
  %v631 = vld [vmem:[%s616 + $0x70] sm:$0xff]
  %v632 = vld [vmem:[%s616 + $0x78] sm:$0xff]
  %s633 = scalar_lea.vmem %s2, 384
  %v634 = vld [vmem:[%s633] sm:$0xff]
  %v635 = vld [vmem:[%s633 + $0x8] sm:$0xff]
  %v636 = vld [vmem:[%s633 + $0x10] sm:$0xff]
  %v637 = vld [vmem:[%s633 + $0x18] sm:$0xff]
  %v638 = vld [vmem:[%s633 + $0x20] sm:$0xff]
  %v639 = vld [vmem:[%s633 + $0x28] sm:$0xff]
  %v640 = vld [vmem:[%s633 + $0x30] sm:$0xff]
  %v641 = vld [vmem:[%s633 + $0x38] sm:$0xff]
  %v642 = vld [vmem:[%s633 + $0x40] sm:$0xff]
  %v643 = vld [vmem:[%s633 + $0x48] sm:$0xff]
  %v644 = vld [vmem:[%s633 + $0x50] sm:$0xff]
  %v645 = vld [vmem:[%s633 + $0x58] sm:$0xff]
  %v646 = vld [vmem:[%s633 + $0x60] sm:$0xff]
  %v647 = vld [vmem:[%s633 + $0x68] sm:$0xff]
  %v648 = vld [vmem:[%s633 + $0x70] sm:$0xff]
  %v649 = vld [vmem:[%s633 + $0x78] sm:$0xff]
  %v666 = vunpack.c.l.b16 %v634
  %v667 = vunpack.c.h.b16 %v634
  %v668 = vunpack.c.l.b16 %v635
  %v669 = vunpack.c.h.b16 %v635
  %v670 = vunpack.c.l.b16 %v636
  %v671 = vunpack.c.h.b16 %v636
  %v672 = vunpack.c.l.b16 %v637
  %v673 = vunpack.c.h.b16 %v637
  %v674 = vunpack.c.l.b16 %v638
  %v675 = vunpack.c.h.b16 %v638
  %v676 = vunpack.c.l.b16 %v639
  %v677 = vunpack.c.h.b16 %v639
  %v678 = vunpack.c.l.b16 %v640
  %v679 = vunpack.c.h.b16 %v640
  %v680 = vunpack.c.l.b16 %v641
  %v681 = vunpack.c.h.b16 %v641
  %v682 = vunpack.c.l.b16 %v642
  %v683 = vunpack.c.h.b16 %v642
  %v684 = vunpack.c.l.b16 %v643
  %v685 = vunpack.c.h.b16 %v643
  %v686 = vunpack.c.l.b16 %v644
  %v687 = vunpack.c.h.b16 %v644
  %v688 = vunpack.c.l.b16 %v645
  %v689 = vunpack.c.h.b16 %v645
  %v690 = vunpack.c.l.b16 %v646
  %v691 = vunpack.c.h.b16 %v646
  %v692 = vunpack.c.l.b16 %v647
  %v693 = vunpack.c.h.b16 %v647
  %v694 = vunpack.c.l.b16 %v648
  %v695 = vunpack.c.h.b16 %v648
  %v696 = vunpack.c.l.b16 %v649
  %v697 = vunpack.c.h.b16 %v649
  %v698 = vpack.c.b16 %v668, %v666
  %v699 = vpack.c.b16 %v669, %v667
  %v700 = vpack.c.b16 %v672, %v670
  %v701 = vpack.c.b16 %v673, %v671
  %v702 = vpack.c.b16 %v676, %v674
  %v703 = vpack.c.b16 %v677, %v675
  %v704 = vpack.c.b16 %v680, %v678
  %v705 = vpack.c.b16 %v681, %v679
  %v706 = vpack.c.b16 %v684, %v682
  %v707 = vpack.c.b16 %v685, %v683
  %v708 = vpack.c.b16 %v688, %v686
  %v709 = vpack.c.b16 %v689, %v687
  %v710 = vpack.c.b16 %v692, %v690
  %v711 = vpack.c.b16 %v693, %v691
  %v712 = vpack.c.b16 %v696, %v694
  %v713 = vpack.c.b16 %v697, %v695
  %730 = vmatprep.subr.bf16.mxu0 %v699
  %731 = vmatpush1.bf16.msra.mxu0 %v698
  %732 = vmatprep.subr.bf16.mxu0 %v701
  %733 = vmatpush1.bf16.msra.mxu0 %v700
  %734 = vmatprep.subr.bf16.mxu0 %v703
  %735 = vmatpush1.bf16.msra.mxu0 %v702
  %736 = vmatprep.subr.bf16.mxu0 %v705
  %737 = vmatpush1.bf16.msra.mxu0 %v704
  %738 = vmatprep.subr.bf16.mxu0 %v707
  %739 = vmatpush1.bf16.msra.mxu0 %v706
  %740 = vmatprep.subr.bf16.mxu0 %v709
  %741 = vmatpush1.bf16.msra.mxu0 %v708
  %742 = vmatprep.subr.bf16.mxu0 %v711
  %743 = vmatpush1.bf16.msra.mxu0 %v710
  %744 = vmatprep.subr.bf16.mxu0 %v713
  %745 = vmatpush1.bf16.msra.mxu0 %v712
  %746 = vmatprep.subr.bf16.mxu0 0
  %747 = vmatpush1.bf16.msra.mxu0 0
  %748 = vmatprep.subr.bf16.mxu0 0
  %749 = vmatpush1.bf16.msra.mxu0 0
  %750 = vmatprep.subr.bf16.mxu0 0
  %751 = vmatpush1.bf16.msra.mxu0 0
  %752 = vmatprep.subr.bf16.mxu0 0
  %753 = vmatpush1.bf16.msra.mxu0 0
  %754 = vmatprep.subr.bf16.mxu0 0
  %755 = vmatpush1.bf16.msra.mxu0 0
  %756 = vmatprep.subr.bf16.mxu0 0
  %757 = vmatpush1.bf16.msra.mxu0 0
  %758 = vmatprep.subr.bf16.mxu0 0
  %759 = vmatpush1.bf16.msra.mxu0 0
  %760 = vmatprep.subr.bf16.mxu0 0
  %761 = vmatpush1.bf16.msra.mxu0 0
  %762 = vmatprep.mubr.bf16.mxu0 0
  %763 = vmatmul.mubr.bf16.gmra.mrb[0].mxu0 %v614
  %v764 = vpop.f32.mrb[0].mxu0
  %v765 = vadd.f32 0.0, %v764
  %v766 = vpop.f32.mrb[0].mxu0
  %v767 = vadd.f32 0.0, %v766
  %v768 = vpop.f32.mrb[0].mxu0
  %v769 = vadd.f32 0.0, %v768
  %v770 = vpop.f32.mrb[0].mxu0
  %v771 = vadd.f32 0.0, %v770
  %772 = vmatprep.mubr.bf16.mxu0 0
  %773 = vmatmul.mubr.bf16.gmra.mrb[0].mxu0 %v615
  %v774 = vpop.f32.mrb[0].mxu0
  %v775 = vadd.f32 0.0, %v774
  %v776 = vpop.f32.mrb[0].mxu0
  %v777 = vadd.f32 0.0, %v776
  %v778 = vpop.f32.mrb[0].mxu0
  %v779 = vpop.f32.mrb[0].mxu0
  %780 = vdwg.mxu0
  %v797 = vunpack.c.l.b16 %v617
  %v798 = vunpack.c.h.b16 %v617
  %v799 = vunpack.c.l.b16 %v618
  %v800 = vunpack.c.h.b16 %v618
  %v801 = vunpack.c.l.b16 %v619
  %v802 = vunpack.c.h.b16 %v619
  %v803 = vunpack.c.l.b16 %v620
  %v804 = vunpack.c.h.b16 %v620
  %v805 = vunpack.c.l.b16 %v621
  %v806 = vunpack.c.h.b16 %v621
  %v807 = vunpack.c.l.b16 %v622
  %v808 = vunpack.c.h.b16 %v622
  %v809 = vunpack.c.l.b16 %v623
  %v810 = vunpack.c.h.b16 %v623
  %v811 = vunpack.c.l.b16 %v624
  %v812 = vunpack.c.h.b16 %v624
  %v813 = vunpack.c.l.b16 %v625
  %v814 = vunpack.c.h.b16 %v625
  %v815 = vunpack.c.l.b16 %v626
  %v816 = vunpack.c.h.b16 %v626
  %v817 = vunpack.c.l.b16 %v627
  %v818 = vunpack.c.h.b16 %v627
  %v819 = vunpack.c.l.b16 %v628
  %v820 = vunpack.c.h.b16 %v628
  %v821 = vunpack.c.l.b16 %v629
  %v822 = vunpack.c.h.b16 %v629
  %v823 = vunpack.c.l.b16 %v630
  %v824 = vunpack.c.h.b16 %v630
  %v825 = vunpack.c.l.b16 %v631
  %v826 = vunpack.c.h.b16 %v631
  %v827 = vunpack.c.l.b16 %v632
  %v828 = vunpack.c.h.b16 %v632
  %v829 = vpack.c.b16 %v799, %v797
  %v830 = vpack.c.b16 %v800, %v798
  %v831 = vpack.c.b16 %v803, %v801
  %v832 = vpack.c.b16 %v804, %v802
  %v833 = vpack.c.b16 %v807, %v805
  %v834 = vpack.c.b16 %v808, %v806
  %v835 = vpack.c.b16 %v811, %v809
  %v836 = vpack.c.b16 %v812, %v810
  %v837 = vpack.c.b16 %v815, %v813
  %v838 = vpack.c.b16 %v816, %v814
  %v839 = vpack.c.b16 %v819, %v817
  %v840 = vpack.c.b16 %v820, %v818
  %v841 = vpack.c.b16 %v823, %v821
  %v842 = vpack.c.b16 %v824, %v822
  %v843 = vpack.c.b16 %v827, %v825
  %v844 = vpack.c.b16 %v828, %v826
  %861 = vmatprep.subr.bf16.mxu0 %v830
  %862 = vmatpush1.bf16.msra.mxu0 %v829
  %863 = vmatprep.subr.bf16.mxu0 %v832
  %864 = vmatpush1.bf16.msra.mxu0 %v831
  %865 = vmatprep.subr.bf16.mxu0 %v834
  %866 = vmatpush1.bf16.msra.mxu0 %v833
  %867 = vmatprep.subr.bf16.mxu0 %v836
  %868 = vmatpush1.bf16.msra.mxu0 %v835
  %869 = vmatprep.subr.bf16.mxu0 %v838
  %870 = vmatpush1.bf16.msra.mxu0 %v837
  %871 = vmatprep.subr.bf16.mxu0 %v840
  %872 = vmatpush1.bf16.msra.mxu0 %v839
  %873 = vmatprep.subr.bf16.mxu0 %v842
  %874 = vmatpush1.bf16.msra.mxu0 %v841
  %875 = vmatprep.subr.bf16.mxu0 %v844
  %876 = vmatpush1.bf16.msra.mxu0 %v843
  %877 = vmatprep.subr.bf16.mxu0 0
  %878 = vmatpush1.bf16.msra.mxu0 0
  %879 = vmatprep.subr.bf16.mxu0 0
  %880 = vmatpush1.bf16.msra.mxu0 0
  %881 = vmatprep.subr.bf16.mxu0 0
  %882 = vmatpush1.bf16.msra.mxu0 0
  %883 = vmatprep.subr.bf16.mxu0 0
  %884 = vmatpush1.bf16.msra.mxu0 0
  %885 = vmatprep.subr.bf16.mxu0 0
  %886 = vmatpush1.bf16.msra.mxu0 0
  %887 = vmatprep.subr.bf16.mxu0 0
  %888 = vmatpush1.bf16.msra.mxu0 0
  %889 = vmatprep.subr.bf16.mxu0 0
  %890 = vmatpush1.bf16.msra.mxu0 0
  %891 = vmatprep.subr.bf16.mxu0 0
  %892 = vmatpush1.bf16.msra.mxu0 0
  %893 = vmatprep.mubr.bf16.mxu0 0
  %894 = vmatmul.mubr.bf16.gmra.mrb[0].mxu0 %v612
  %v895 = vpop.f32.mrb[0].mxu0
  %v896 = vadd.f32 %v765, %v895
  %v897 = vpop.f32.mrb[0].mxu0
  %v898 = vadd.f32 %v767, %v897
  %v899 = vpop.f32.mrb[0].mxu0
  %v900 = vadd.f32 %v769, %v899
  %v901 = vpop.f32.mrb[0].mxu0
  %v902 = vadd.f32 %v771, %v901
  %903 = vmatprep.mubr.bf16.mxu0 0
  %904 = vmatmul.mubr.bf16.gmra.mrb[0].mxu0 %v613
  %v905 = vpop.f32.mrb[0].mxu0
  %v906 = vadd.f32 %v775, %v905
  %v907 = vpop.f32.mrb[0].mxu0
  %v908 = vadd.f32 %v777, %v907
  %v909 = vpop.f32.mrb[0].mxu0
  %v910 = vpop.f32.mrb[0].mxu0
  %911 = vdwg.mxu0
  %912 = vst [vmem:[#allocation2] sm:$0xff] %v896
  %913 = vst [vmem:[#allocation2 + $0x8] sm:$0xff] %v898
  %914 = vst [vmem:[#allocation2 + $0x10] sm:$0xff] %v900
  %915 = vst [vmem:[#allocation2 + $0x18] sm:$0xff] %v902
  %916 = vst [vmem:[#allocation2 + $0x20] sm:$0x3] %v906
  %917 = vst [vmem:[#allocation2 + $0x28] sm:$0x3] %v908
  %s918 = scalar_lea.vmem %s3, 1
  %v919 = vld [vmem:[%s918] sm:$0x1]
  %v920 = vld [vmem:[#allocation2] sm:$0xff]
  %v921 = vld [vmem:[#allocation2 + $0x8] sm:$0xfe]
  %v922 = vld [vmem:[#allocation2 + $0x18] sm:$0x1]
  %v925 = vrot.slane %v921, 1
  %v926 = vrot.slane %v922, 1
  %v927 = vsel %vm418, %v925, %v926
  %v929 = vadd.f32 %v920, %v927
  %v931 = vlaneseq
  %v932 = vshrl.u32 %v931, 7
  %v933 = vsub.s32 0, %v932
  %v934 = vrot.slane %v919, %v933
  %v936 = vadd.f32 %v929, %v934
  %v937 = vmul.f32 %v936, 0.2
  %v938 = vmax.f32 %v936, %v937
  %939 = vst [vmem:[%s11] sm:$0xff] %v938
  %v940 = vld [vmem:[#allocation2 + $0x10] sm:$0xfe]
  %v941 = vld [vmem:[#allocation2 + $0x20] sm:$0x1]
  %v942 = vld [vmem:[#allocation2 + $0x18] sm:$0xfc]
  %v943 = vld [vmem:[#allocation2 + $0x28] sm:$0x3]
  %v946 = vrot.slane %v942, 1
  %v947 = vrot.slane %v943, 1
  %v948 = vsel %vm418, %v946, %v947
  %v951 = vadd.f32 %v940, %v948
  %v952 = vadd.f32 %v941, %v947
  %v953 = vadd.f32 %v951, %v934
  %v954 = vadd.f32 %v952, %v934
  %v955 = vmul.f32 %v953, 0.2
  %v956 = vmul.f32 %v954, 0.2
  %v957 = vmax.f32 %v953, %v955
  %v958 = vmax.f32 %v954, %v956
  %959 = vst [vmem:[%s11 + $0x7] sm:$0xfe] %v957
  %960 = vst [vmem:[%s11 + $0xf] sm:$0x1] %v958
  %v961 = vld [vmem:[%s11] sm:$0xff]
  %v962 = vld [vmem:[%s11 + $0x8] sm:$0xff]
  %v963 = vpack.c.bf16 %v962, %v961
  %v964 = vld [vmem:[%s5] sm:$0xf]
  %v965 = vld [vmem:[%s5 + $0x4] sm:$0x1]
  %v968 = vunpack.c.l.b16 %v964
  %v969 = vunpack.c.l.b16 %v965
  %v970 = vpack.c.b16 %v969, %v968
  %vm971 = vcmask 130048
  %v973 = vsel %vm971, %v970, 0
  %975 = vmatprep.subr.bf16.mxu0 0
  %976 = vmatpush1.bf16.msra.mxu0 %v963
  %977 = vmatprep.subr.bf16.mxu0 0
  %978 = vmatpush1.bf16.msra.mxu0 0
  %979 = vmatprep.subr.bf16.mxu0 0
  %980 = vmatpush1.bf16.msra.mxu0 0
  %981 = vmatprep.subr.bf16.mxu0 0
  %982 = vmatpush1.bf16.msra.mxu0 0
  %983 = vmatprep.subr.bf16.mxu0 0
  %984 = vmatpush1.bf16.msra.mxu0 0
  %985 = vmatprep.subr.bf16.mxu0 0
  %986 = vmatpush1.bf16.msra.mxu0 0
  %987 = vmatprep.subr.bf16.mxu0 0
  %988 = vmatpush1.bf16.msra.mxu0 0
  %989 = vmatprep.subr.bf16.mxu0 0
  %990 = vmatpush1.bf16.msra.mxu0 0
  %991 = vmatprep.subr.bf16.mxu0 0
  %992 = vmatpush1.bf16.msra.mxu0 0
  %993 = vmatprep.subr.bf16.mxu0 0
  %994 = vmatpush1.bf16.msra.mxu0 0
  %995 = vmatprep.subr.bf16.mxu0 0
  %996 = vmatpush1.bf16.msra.mxu0 0
  %997 = vmatprep.subr.bf16.mxu0 0
  %998 = vmatpush1.bf16.msra.mxu0 0
  %999 = vmatprep.subr.bf16.mxu0 0
  %1000 = vmatpush1.bf16.msra.mxu0 0
  %1001 = vmatprep.subr.bf16.mxu0 0
  %1002 = vmatpush1.bf16.msra.mxu0 0
  %1003 = vmatprep.subr.bf16.mxu0 0
  %1004 = vmatpush1.bf16.msra.mxu0 0
  %1005 = vmatprep.subr.bf16.mxu0 0
  %1006 = vmatpush1.bf16.msra.mxu0 0
  %1007 = vmatprep.mubr.bf16.mxu0 0
  %1008 = vmatmul.mubr.bf16.gmra.mrb[0].mxu0 %v973
  %v1009 = vpop.f32.mrb[0].mxu0
  %v1010 = vadd.f32 0.0, %v1009
  %v1011 = vpop.f32.mrb[0].mxu0
  %v1012 = vpop.f32.mrb[0].mxu0
  %v1013 = vadd.f32 0.0, %v1012
  %v1014 = vpop.f32.mrb[0].mxu0
  %1015 = vdwg.mxu0
  %s1016 = scalar_lea.vmem %s5, 8
  %v1017 = vld [vmem:[%s1016] sm:$0xf]
  %v1018 = vld [vmem:[%s1016 + $0x4] sm:$0x1]
  %v1021 = vunpack.c.l.b16 %v1017
  %v1022 = vunpack.c.l.b16 %v1018
  %v1023 = vpack.c.b16 %v1022, %v1021
  %v1025 = vsel %vm971, %v1023, 0
  %1027 = vmatprep.subr.bf16.mxu0 0
  %1028 = vmatpush1.bf16.msra.mxu0 %v963
  %1029 = vmatprep.subr.bf16.mxu0 0
  %1030 = vmatpush1.bf16.msra.mxu0 0
  %1031 = vmatprep.subr.bf16.mxu0 0
  %1032 = vmatpush1.bf16.msra.mxu0 0
  %1033 = vmatprep.subr.bf16.mxu0 0
  %1034 = vmatpush1.bf16.msra.mxu0 0
  %1035 = vmatprep.subr.bf16.mxu0 0
  %1036 = vmatpush1.bf16.msra.mxu0 0
  %1037 = vmatprep.subr.bf16.mxu0 0
  %1038 = vmatpush1.bf16.msra.mxu0 0
  %1039 = vmatprep.subr.bf16.mxu0 0
  %1040 = vmatpush1.bf16.msra.mxu0 0
  %1041 = vmatprep.subr.bf16.mxu0 0
  %1042 = vmatpush1.bf16.msra.mxu0 0
  %1043 = vmatprep.subr.bf16.mxu0 0
  %1044 = vmatpush1.bf16.msra.mxu0 0
  %1045 = vmatprep.subr.bf16.mxu0 0
  %1046 = vmatpush1.bf16.msra.mxu0 0
  %1047 = vmatprep.subr.bf16.mxu0 0
  %1048 = vmatpush1.bf16.msra.mxu0 0
  %1049 = vmatprep.subr.bf16.mxu0 0
  %1050 = vmatpush1.bf16.msra.mxu0 0
  %1051 = vmatprep.subr.bf16.mxu0 0
  %1052 = vmatpush1.bf16.msra.mxu0 0
  %1053 = vmatprep.subr.bf16.mxu0 0
  %1054 = vmatpush1.bf16.msra.mxu0 0
  %1055 = vmatprep.subr.bf16.mxu0 0
  %1056 = vmatpush1.bf16.msra.mxu0 0
  %1057 = vmatprep.subr.bf16.mxu0 0
  %1058 = vmatpush1.bf16.msra.mxu0 0
  %1059 = vmatprep.mubr.bf16.mxu0 0
  %1060 = vmatmul.mubr.bf16.gmra.mrb[0].mxu0 %v1025
  %v1061 = vpop.f32.mrb[0].mxu0
  %v1062 = vadd.f32 0.0, %v1061
  %v1063 = vpop.f32.mrb[0].mxu0
  %v1064 = vpop.f32.mrb[0].mxu0
  %v1065 = vadd.f32 0.0, %v1064
  %v1066 = vpop.f32.mrb[0].mxu0
  %1067 = vdwg.mxu0
  %v1068 = vpack.c.bf16 %v1013, %v1010
  %v1069 = vpack.c.bf16 %v1065, %v1062
  %s1070 = scalar_lea.vmem %s2, 512
  %v1071 = vld [vmem:[%s1070] sm:$0xff]
  %v1072 = vld [vmem:[%s1070 + $0x8] sm:$0xff]
  %v1073 = vld [vmem:[%s1070 + $0x10] sm:$0xff]
  %v1074 = vld [vmem:[%s1070 + $0x18] sm:$0xff]
  %v1075 = vld [vmem:[%s1070 + $0x20] sm:$0xff]
  %v1076 = vld [vmem:[%s1070 + $0x28] sm:$0xff]
  %v1077 = vld [vmem:[%s1070 + $0x30] sm:$0xff]
  %v1078 = vld [vmem:[%s1070 + $0x38] sm:$0xff]
  %v1079 = vld [vmem:[%s1070 + $0x40] sm:$0xff]
  %v1080 = vld [vmem:[%s1070 + $0x48] sm:$0xff]
  %v1081 = vld [vmem:[%s1070 + $0x50] sm:$0xff]
  %v1082 = vld [vmem:[%s1070 + $0x58] sm:$0xff]
  %v1083 = vld [vmem:[%s1070 + $0x60] sm:$0xff]
  %v1084 = vld [vmem:[%s1070 + $0x68] sm:$0xff]
  %v1085 = vld [vmem:[%s1070 + $0x70] sm:$0xff]
  %v1086 = vld [vmem:[%s1070 + $0x78] sm:$0xff]
  %s1087 = scalar_lea.vmem %s2, 640
  %v1088 = vld [vmem:[%s1087] sm:$0xff]
  %v1089 = vld [vmem:[%s1087 + $0x8] sm:$0xff]
  %v1090 = vld [vmem:[%s1087 + $0x10] sm:$0xff]
  %v1091 = vld [vmem:[%s1087 + $0x18] sm:$0xff]
  %v1092 = vld [vmem:[%s1087 + $0x20] sm:$0xff]
  %v1093 = vld [vmem:[%s1087 + $0x28] sm:$0xff]
  %v1094 = vld [vmem:[%s1087 + $0x30] sm:$0xff]
  %v1095 = vld [vmem:[%s1087 + $0x38] sm:$0xff]
  %v1096 = vld [vmem:[%s1087 + $0x40] sm:$0xff]
  %v1097 = vld [vmem:[%s1087 + $0x48] sm:$0xff]
  %v1098 = vld [vmem:[%s1087 + $0x50] sm:$0xff]
  %v1099 = vld [vmem:[%s1087 + $0x58] sm:$0xff]
  %v1100 = vld [vmem:[%s1087 + $0x60] sm:$0xff]
  %v1101 = vld [vmem:[%s1087 + $0x68] sm:$0xff]
  %v1102 = vld [vmem:[%s1087 + $0x70] sm:$0xff]
  %v1103 = vld [vmem:[%s1087 + $0x78] sm:$0xff]
  %v1120 = vunpack.c.l.b16 %v1088
  %v1121 = vunpack.c.h.b16 %v1088
  %v1122 = vunpack.c.l.b16 %v1089
  %v1123 = vunpack.c.h.b16 %v1089
  %v1124 = vunpack.c.l.b16 %v1090
  %v1125 = vunpack.c.h.b16 %v1090
  %v1126 = vunpack.c.l.b16 %v1091
  %v1127 = vunpack.c.h.b16 %v1091
  %v1128 = vunpack.c.l.b16 %v1092
  %v1129 = vunpack.c.h.b16 %v1092
  %v1130 = vunpack.c.l.b16 %v1093
  %v1131 = vunpack.c.h.b16 %v1093
  %v1132 = vunpack.c.l.b16 %v1094
  %v1133 = vunpack.c.h.b16 %v1094
  %v1134 = vunpack.c.l.b16 %v1095
  %v1135 = vunpack.c.h.b16 %v1095
  %v1136 = vunpack.c.l.b16 %v1096
  %v1137 = vunpack.c.h.b16 %v1096
  %v1138 = vunpack.c.l.b16 %v1097
  %v1139 = vunpack.c.h.b16 %v1097
  %v1140 = vunpack.c.l.b16 %v1098
  %v1141 = vunpack.c.h.b16 %v1098
  %v1142 = vunpack.c.l.b16 %v1099
  %v1143 = vunpack.c.h.b16 %v1099
  %v1144 = vunpack.c.l.b16 %v1100
  %v1145 = vunpack.c.h.b16 %v1100
  %v1146 = vunpack.c.l.b16 %v1101
  %v1147 = vunpack.c.h.b16 %v1101
  %v1148 = vunpack.c.l.b16 %v1102
  %v1149 = vunpack.c.h.b16 %v1102
  %v1150 = vunpack.c.l.b16 %v1103
  %v1151 = vunpack.c.h.b16 %v1103
  %v1152 = vpack.c.b16 %v1122, %v1120
  %v1153 = vpack.c.b16 %v1123, %v1121
  %v1154 = vpack.c.b16 %v1126, %v1124
  %v1155 = vpack.c.b16 %v1127, %v1125
  %v1156 = vpack.c.b16 %v1130, %v1128
  %v1157 = vpack.c.b16 %v1131, %v1129
  %v1158 = vpack.c.b16 %v1134, %v1132
  %v1159 = vpack.c.b16 %v1135, %v1133
  %v1160 = vpack.c.b16 %v1138, %v1136
  %v1161 = vpack.c.b16 %v1139, %v1137
  %v1162 = vpack.c.b16 %v1142, %v1140
  %v1163 = vpack.c.b16 %v1143, %v1141
  %v1164 = vpack.c.b16 %v1146, %v1144
  %v1165 = vpack.c.b16 %v1147, %v1145
  %v1166 = vpack.c.b16 %v1150, %v1148
  %v1167 = vpack.c.b16 %v1151, %v1149
  %1184 = vmatprep.subr.bf16.mxu0 %v1153
  %1185 = vmatpush1.bf16.msra.mxu0 %v1152
  %1186 = vmatprep.subr.bf16.mxu0 %v1155
  %1187 = vmatpush1.bf16.msra.mxu0 %v1154
  %1188 = vmatprep.subr.bf16.mxu0 %v1157
  %1189 = vmatpush1.bf16.msra.mxu0 %v1156
  %1190 = vmatprep.subr.bf16.mxu0 %v1159
  %1191 = vmatpush1.bf16.msra.mxu0 %v1158
  %1192 = vmatprep.subr.bf16.mxu0 %v1161
  %1193 = vmatpush1.bf16.msra.mxu0 %v1160
  %1194 = vmatprep.subr.bf16.mxu0 %v1163
  %1195 = vmatpush1.bf16.msra.mxu0 %v1162
  %1196 = vmatprep.subr.bf16.mxu0 %v1165
  %1197 = vmatpush1.bf16.msra.mxu0 %v1164
  %1198 = vmatprep.subr.bf16.mxu0 %v1167
  %1199 = vmatpush1.bf16.msra.mxu0 %v1166
  %1200 = vmatprep.subr.bf16.mxu0 0
  %1201 = vmatpush1.bf16.msra.mxu0 0
  %1202 = vmatprep.subr.bf16.mxu0 0
  %1203 = vmatpush1.bf16.msra.mxu0 0
  %1204 = vmatprep.subr.bf16.mxu0 0
  %1205 = vmatpush1.bf16.msra.mxu0 0
  %1206 = vmatprep.subr.bf16.mxu0 0
  %1207 = vmatpush1.bf16.msra.mxu0 0
  %1208 = vmatprep.subr.bf16.mxu0 0
  %1209 = vmatpush1.bf16.msra.mxu0 0
  %1210 = vmatprep.subr.bf16.mxu0 0
  %1211 = vmatpush1.bf16.msra.mxu0 0
  %1212 = vmatprep.subr.bf16.mxu0 0
  %1213 = vmatpush1.bf16.msra.mxu0 0
  %1214 = vmatprep.subr.bf16.mxu0 0
  %1215 = vmatpush1.bf16.msra.mxu0 0
  %1216 = vmatprep.mubr.bf16.mxu0 0
  %1217 = vmatmul.mubr.bf16.gmra.mrb[0].mxu0 %v1069
  %v1218 = vpop.f32.mrb[0].mxu0
  %v1219 = vadd.f32 0.0, %v1218
  %v1220 = vpop.f32.mrb[0].mxu0
  %v1221 = vadd.f32 0.0, %v1220
  %v1222 = vpop.f32.mrb[0].mxu0
  %v1223 = vadd.f32 0.0, %v1222
  %v1224 = vpop.f32.mrb[0].mxu0
  %v1225 = vadd.f32 0.0, %v1224
  %1226 = vdwg.mxu0
  %v1243 = vunpack.c.l.b16 %v1071
  %v1244 = vunpack.c.h.b16 %v1071
  %v1245 = vunpack.c.l.b16 %v1072
  %v1246 = vunpack.c.h.b16 %v1072
  %v1247 = vunpack.c.l.b16 %v1073
  %v1248 = vunpack.c.h.b16 %v1073
  %v1249 = vunpack.c.l.b16 %v1074
  %v1250 = vunpack.c.h.b16 %v1074
  %v1251 = vunpack.c.l.b16 %v1075
  %v1252 = vunpack.c.h.b16 %v1075
  %v1253 = vunpack.c.l.b16 %v1076
  %v1254 = vunpack.c.h.b16 %v1076
  %v1255 = vunpack.c.l.b16 %v1077
  %v1256 = vunpack.c.h.b16 %v1077
  %v1257 = vunpack.c.l.b16 %v1078
  %v1258 = vunpack.c.h.b16 %v1078
  %v1259 = vunpack.c.l.b16 %v1079
  %v1260 = vunpack.c.h.b16 %v1079
  %v1261 = vunpack.c.l.b16 %v1080
  %v1262 = vunpack.c.h.b16 %v1080
  %v1263 = vunpack.c.l.b16 %v1081
  %v1264 = vunpack.c.h.b16 %v1081
  %v1265 = vunpack.c.l.b16 %v1082
  %v1266 = vunpack.c.h.b16 %v1082
  %v1267 = vunpack.c.l.b16 %v1083
  %v1268 = vunpack.c.h.b16 %v1083
  %v1269 = vunpack.c.l.b16 %v1084
  %v1270 = vunpack.c.h.b16 %v1084
  %v1271 = vunpack.c.l.b16 %v1085
  %v1272 = vunpack.c.h.b16 %v1085
  %v1273 = vunpack.c.l.b16 %v1086
  %v1274 = vunpack.c.h.b16 %v1086
  %v1275 = vpack.c.b16 %v1245, %v1243
  %v1276 = vpack.c.b16 %v1246, %v1244
  %v1277 = vpack.c.b16 %v1249, %v1247
  %v1278 = vpack.c.b16 %v1250, %v1248
  %v1279 = vpack.c.b16 %v1253, %v1251
  %v1280 = vpack.c.b16 %v1254, %v1252
  %v1281 = vpack.c.b16 %v1257, %v1255
  %v1282 = vpack.c.b16 %v1258, %v1256
  %v1283 = vpack.c.b16 %v1261, %v1259
  %v1284 = vpack.c.b16 %v1262, %v1260
  %v1285 = vpack.c.b16 %v1265, %v1263
  %v1286 = vpack.c.b16 %v1266, %v1264
  %v1287 = vpack.c.b16 %v1269, %v1267
  %v1288 = vpack.c.b16 %v1270, %v1268
  %v1289 = vpack.c.b16 %v1273, %v1271
  %v1290 = vpack.c.b16 %v1274, %v1272
  %1307 = vmatprep.subr.bf16.mxu0 %v1276
  %1308 = vmatpush1.bf16.msra.mxu0 %v1275
  %1309 = vmatprep.subr.bf16.mxu0 %v1278
  %1310 = vmatpush1.bf16.msra.mxu0 %v1277
  %1311 = vmatprep.subr.bf16.mxu0 %v1280
  %1312 = vmatpush1.bf16.msra.mxu0 %v1279
  %1313 = vmatprep.subr.bf16.mxu0 %v1282
  %1314 = vmatpush1.bf16.msra.mxu0 %v1281
  %1315 = vmatprep.subr.bf16.mxu0 %v1284
  %1316 = vmatpush1.bf16.msra.mxu0 %v1283
  %1317 = vmatprep.subr.bf16.mxu0 %v1286
  %1318 = vmatpush1.bf16.msra.mxu0 %v1285
  %1319 = vmatprep.subr.bf16.mxu0 %v1288
  %1320 = vmatpush1.bf16.msra.mxu0 %v1287
  %1321 = vmatprep.subr.bf16.mxu0 %v1290
  %1322 = vmatpush1.bf16.msra.mxu0 %v1289
  %1323 = vmatprep.subr.bf16.mxu0 0
  %1324 = vmatpush1.bf16.msra.mxu0 0
  %1325 = vmatprep.subr.bf16.mxu0 0
  %1326 = vmatpush1.bf16.msra.mxu0 0
  %1327 = vmatprep.subr.bf16.mxu0 0
  %1328 = vmatpush1.bf16.msra.mxu0 0
  %1329 = vmatprep.subr.bf16.mxu0 0
  %1330 = vmatpush1.bf16.msra.mxu0 0
  %1331 = vmatprep.subr.bf16.mxu0 0
  %1332 = vmatpush1.bf16.msra.mxu0 0
  %1333 = vmatprep.subr.bf16.mxu0 0
  %1334 = vmatpush1.bf16.msra.mxu0 0
  %1335 = vmatprep.subr.bf16.mxu0 0
  %1336 = vmatpush1.bf16.msra.mxu0 0
  %1337 = vmatprep.subr.bf16.mxu0 0
  %1338 = vmatpush1.bf16.msra.mxu0 0
  %1339 = vmatprep.mubr.bf16.mxu0 0
  %1340 = vmatmul.mubr.bf16.gmra.mrb[0].mxu0 %v1068
  %v1341 = vpop.f32.mrb[0].mxu0
  %v1342 = vadd.f32 %v1219, %v1341
  %v1343 = vpop.f32.mrb[0].mxu0
  %v1344 = vadd.f32 %v1221, %v1343
  %v1345 = vpop.f32.mrb[0].mxu0
  %v1346 = vadd.f32 %v1223, %v1345
  %v1347 = vpop.f32.mrb[0].mxu0
  %v1348 = vadd.f32 %v1225, %v1347
  %1349 = vdwg.mxu0
  %1350 = vst [vmem:[#allocation2] sm:$0xff] %v1342
  %1351 = vst [vmem:[#allocation2 + $0x8] sm:$0xff] %v1344
  %1352 = vst [vmem:[#allocation2 + $0x10] sm:$0x3] %v1346
  %1353 = vst [vmem:[#allocation2 + $0x18] sm:$0x3] %v1348
  %s1354 = scalar_lea.vmem %s3, 2
  %v1355 = vld [vmem:[%s1354] sm:$0x1]
  %v1356 = vld [vmem:[#allocation2] sm:$0xf]
  %v1357 = vld [vmem:[#allocation2 + $0x8] sm:$0x1e]
  %v1359 = vrot.slane %v1357, 1
  %v1361 = vadd.f32 %v1356, %v1359
  %v1363 = vlaneseq
  %v1364 = vshrl.u32 %v1363, 7
  %v1365 = vsub.s32 0, %v1364
  %v1366 = vrot.slane %v1355, %v1365
  %v1368 = vadd.f32 %v1361, %v1366
  %v1369 = vmul.f32 %v1368, 0.2
  %v1370 = vmax.f32 %v1368, %v1369
  %1371 = vst [vmem:[%s12] sm:$0xf] %v1370
  %v1372 = vld [vmem:[#allocation2] sm:$0xe0]
  %v1373 = vld [vmem:[#allocation2 + $0x10] sm:$0x1]
  %v1374 = vld [vmem:[#allocation2 + $0x8] sm:$0xc0]
  %v1375 = vld [vmem:[#allocation2 + $0x18] sm:$0x3]
  %v1378 = vrot.slane %v1374, 1
  %v1379 = vrot.slane %v1375, 1
  %v1380 = vsel %vm418, %v1378, %v1379
  %v1383 = vadd.f32 %v1372, %v1380
  %v1384 = vadd.f32 %v1373, %v1379
  %v1385 = vadd.f32 %v1383, %v1366
  %v1386 = vadd.f32 %v1384, %v1366
  %v1387 = vmul.f32 %v1385, 0.2
  %v1388 = vmul.f32 %v1386, 0.2
  %v1389 = vmax.f32 %v1385, %v1387
  %v1390 = vmax.f32 %v1386, %v1388
  %1391 = vst [vmem:[%s12 - $0x1] sm:$0xe0] %v1389
  %1392 = vst [vmem:[%s12 + $0x7] sm:$0x1] %v1390
  %v1393 = vld [vmem:[%s12] sm:$0xff]
  %v1394 = vpack.c.bf16 %v1393, %v1393
  %v1395 = vld [vmem:[%s6] sm:$0x7]
  %vm1396 = vcmask 64512
  %v1398 = vsel %vm1396, %v1395, 0
  %vm1400 = vcmask 1043456
  %v1402 = vsel %vm1400, %v1394, 0
  %1404 = vmatprep.subr.bf16.mxu0 0
  %1405 = vmatpush1.bf16.msra.mxu0 %v1402
  %1406 = vmatprep.subr.bf16.mxu0 0
  %1407 = vmatpush1.bf16.msra.mxu0 0
  %1408 = vmatprep.subr.bf16.mxu0 0
  %1409 = vmatpush1.bf16.msra.mxu0 0
  %1410 = vmatprep.subr.bf16.mxu0 0
  %1411 = vmatpush1.bf16.msra.mxu0 0
  %1412 = vmatprep.subr.bf16.mxu0 0
  %1413 = vmatpush1.bf16.msra.mxu0 0
  %1414 = vmatprep.subr.bf16.mxu0 0
  %1415 = vmatpush1.bf16.msra.mxu0 0
  %1416 = vmatprep.subr.bf16.mxu0 0
  %1417 = vmatpush1.bf16.msra.mxu0 0
  %1418 = vmatprep.subr.bf16.mxu0 0
  %1419 = vmatpush1.bf16.msra.mxu0 0
  %1420 = vmatprep.subr.bf16.mxu0 0
  %1421 = vmatpush1.bf16.msra.mxu0 0
  %1422 = vmatprep.subr.bf16.mxu0 0
  %1423 = vmatpush1.bf16.msra.mxu0 0
  %1424 = vmatprep.subr.bf16.mxu0 0
  %1425 = vmatpush1.bf16.msra.mxu0 0
  %1426 = vmatprep.subr.bf16.mxu0 0
  %1427 = vmatpush1.bf16.msra.mxu0 0
  %1428 = vmatprep.subr.bf16.mxu0 0
  %1429 = vmatpush1.bf16.msra.mxu0 0
  %1430 = vmatprep.subr.bf16.mxu0 0
  %1431 = vmatpush1.bf16.msra.mxu0 0
  %1432 = vmatprep.subr.bf16.mxu0 0
  %1433 = vmatpush1.bf16.msra.mxu0 0
  %1434 = vmatprep.subr.bf16.mxu0 0
  %1435 = vmatpush1.bf16.msra.mxu0 0
  %1436 = vmatprep.mubr.bf16.mxu0 0
  %1437 = vmatmul.mubr.bf16.gmra.mrb[0].mxu0 %v1398
  %v1438 = vpop.f32.mrb[0].mxu0
  %v1439 = vadd.f32 0.0, %v1438
  %v1440 = vpop.f32.mrb[0].mxu0
  %v1441 = vpop.f32.mrb[0].mxu0
  %v1442 = vpop.f32.mrb[0].mxu0
  %1443 = vdwg.mxu0
  %s1444 = scalar_lea.vmem %s6, 4
  %v1445 = vld [vmem:[%s1444] sm:$0x7]
  %v1447 = vsel %vm1396, %v1445, 0
  %1449 = vmatprep.subr.bf16.mxu0 0
  %1450 = vmatpush1.bf16.msra.mxu0 %v1402
  %1451 = vmatprep.subr.bf16.mxu0 0
  %1452 = vmatpush1.bf16.msra.mxu0 0
  %1453 = vmatprep.subr.bf16.mxu0 0
  %1454 = vmatpush1.bf16.msra.mxu0 0
  %1455 = vmatprep.subr.bf16.mxu0 0
  %1456 = vmatpush1.bf16.msra.mxu0 0
  %1457 = vmatprep.subr.bf16.mxu0 0
  %1458 = vmatpush1.bf16.msra.mxu0 0
  %1459 = vmatprep.subr.bf16.mxu0 0
  %1460 = vmatpush1.bf16.msra.mxu0 0
  %1461 = vmatprep.subr.bf16.mxu0 0
  %1462 = vmatpush1.bf16.msra.mxu0 0
  %1463 = vmatprep.subr.bf16.mxu0 0
  %1464 = vmatpush1.bf16.msra.mxu0 0
  %1465 = vmatprep.subr.bf16.mxu0 0
  %1466 = vmatpush1.bf16.msra.mxu0 0
  %1467 = vmatprep.subr.bf16.mxu0 0
  %1468 = vmatpush1.bf16.msra.mxu0 0
  %1469 = vmatprep.subr.bf16.mxu0 0
  %1470 = vmatpush1.bf16.msra.mxu0 0
  %1471 = vmatprep.subr.bf16.mxu0 0
  %1472 = vmatpush1.bf16.msra.mxu0 0
  %1473 = vmatprep.subr.bf16.mxu0 0
  %1474 = vmatpush1.bf16.msra.mxu0 0
  %1475 = vmatprep.subr.bf16.mxu0 0
  %1476 = vmatpush1.bf16.msra.mxu0 0
  %1477 = vmatprep.subr.bf16.mxu0 0
  %1478 = vmatpush1.bf16.msra.mxu0 0
  %1479 = vmatprep.subr.bf16.mxu0 0
  %1480 = vmatpush1.bf16.msra.mxu0 0
  %1481 = vmatprep.mubr.bf16.mxu0 0
  %1482 = vmatmul.mubr.bf16.gmra.mrb[0].mxu0 %v1447
  %v1483 = vpop.f32.mrb[0].mxu0
  %v1484 = vadd.f32 0.0, %v1483
  %v1485 = vpop.f32.mrb[0].mxu0
  %v1486 = vpop.f32.mrb[0].mxu0
  %v1487 = vpop.f32.mrb[0].mxu0
  %1488 = vdwg.mxu0
  %v1489 = vpack.c.bf16 %v1439, %v1439
  %v1490 = vpack.c.bf16 %v1484, %v1484
  %s1491 = scalar_lea.vmem %s2, 768
  %v1492 = vld [vmem:[%s1491] sm:$0xff]
  %v1493 = vld [vmem:[%s1491 + $0x8] sm:$0xff]
  %v1494 = vld [vmem:[%s1491 + $0x10] sm:$0xff]
  %v1495 = vld [vmem:[%s1491 + $0x18] sm:$0xff]
  %v1496 = vld [vmem:[%s1491 + $0x20] sm:$0xff]
  %v1497 = vld [vmem:[%s1491 + $0x28] sm:$0xff]
  %v1498 = vld [vmem:[%s1491 + $0x30] sm:$0xff]
  %v1499 = vld [vmem:[%s1491 + $0x38] sm:$0xff]
  %v1500 = vld [vmem:[%s1491 + $0x40] sm:$0xff]
  %v1501 = vld [vmem:[%s1491 + $0x48] sm:$0xff]
  %v1502 = vld [vmem:[%s1491 + $0x50] sm:$0xff]
  %v1503 = vld [vmem:[%s1491 + $0x58] sm:$0xff]
  %v1504 = vld [vmem:[%s1491 + $0x60] sm:$0xff]
  %v1505 = vld [vmem:[%s1491 + $0x68] sm:$0xff]
  %v1506 = vld [vmem:[%s1491 + $0x70] sm:$0xff]
  %v1507 = vld [vmem:[%s1491 + $0x78] sm:$0xff]
  %s1508 = scalar_lea.vmem %s2, 896
  %v1509 = vld [vmem:[%s1508] sm:$0xff]
  %v1510 = vld [vmem:[%s1508 + $0x8] sm:$0xff]
  %v1511 = vld [vmem:[%s1508 + $0x10] sm:$0xff]
  %v1512 = vld [vmem:[%s1508 + $0x18] sm:$0xff]
  %v1513 = vld [vmem:[%s1508 + $0x20] sm:$0xff]
  %v1514 = vld [vmem:[%s1508 + $0x28] sm:$0xff]
  %v1515 = vld [vmem:[%s1508 + $0x30] sm:$0xff]
  %v1516 = vld [vmem:[%s1508 + $0x38] sm:$0xff]
  %v1517 = vld [vmem:[%s1508 + $0x40] sm:$0xff]
  %v1518 = vld [vmem:[%s1508 + $0x48] sm:$0xff]
  %v1519 = vld [vmem:[%s1508 + $0x50] sm:$0xff]
  %v1520 = vld [vmem:[%s1508 + $0x58] sm:$0xff]
  %v1521 = vld [vmem:[%s1508 + $0x60] sm:$0xff]
  %v1522 = vld [vmem:[%s1508 + $0x68] sm:$0xff]
  %v1523 = vld [vmem:[%s1508 + $0x70] sm:$0xff]
  %v1524 = vld [vmem:[%s1508 + $0x78] sm:$0xff]
  %v1541 = vunpack.c.l.b16 %v1509
  %v1542 = vunpack.c.h.b16 %v1509
  %v1543 = vunpack.c.l.b16 %v1510
  %v1544 = vunpack.c.h.b16 %v1510
  %v1545 = vunpack.c.l.b16 %v1511
  %v1546 = vunpack.c.h.b16 %v1511
  %v1547 = vunpack.c.l.b16 %v1512
  %v1548 = vunpack.c.h.b16 %v1512
  %v1549 = vunpack.c.l.b16 %v1513
  %v1550 = vunpack.c.h.b16 %v1513
  %v1551 = vunpack.c.l.b16 %v1514
  %v1552 = vunpack.c.h.b16 %v1514
  %v1553 = vunpack.c.l.b16 %v1515
  %v1554 = vunpack.c.h.b16 %v1515
  %v1555 = vunpack.c.l.b16 %v1516
  %v1556 = vunpack.c.h.b16 %v1516
  %v1557 = vunpack.c.l.b16 %v1517
  %v1558 = vunpack.c.h.b16 %v1517
  %v1559 = vunpack.c.l.b16 %v1518
  %v1560 = vunpack.c.h.b16 %v1518
  %v1561 = vunpack.c.l.b16 %v1519
  %v1562 = vunpack.c.h.b16 %v1519
  %v1563 = vunpack.c.l.b16 %v1520
  %v1564 = vunpack.c.h.b16 %v1520
  %v1565 = vunpack.c.l.b16 %v1521
  %v1566 = vunpack.c.h.b16 %v1521
  %v1567 = vunpack.c.l.b16 %v1522
  %v1568 = vunpack.c.h.b16 %v1522
  %v1569 = vunpack.c.l.b16 %v1523
  %v1570 = vunpack.c.h.b16 %v1523
  %v1571 = vunpack.c.l.b16 %v1524
  %v1572 = vunpack.c.h.b16 %v1524
  %v1573 = vpack.c.b16 %v1543, %v1541
  %v1574 = vpack.c.b16 %v1544, %v1542
  %v1575 = vpack.c.b16 %v1547, %v1545
  %v1576 = vpack.c.b16 %v1548, %v1546
  %v1577 = vpack.c.b16 %v1551, %v1549
  %v1578 = vpack.c.b16 %v1552, %v1550
  %v1579 = vpack.c.b16 %v1555, %v1553
  %v1580 = vpack.c.b16 %v1556, %v1554
  %v1581 = vpack.c.b16 %v1559, %v1557
  %v1582 = vpack.c.b16 %v1560, %v1558
  %v1583 = vpack.c.b16 %v1563, %v1561
  %v1584 = vpack.c.b16 %v1564, %v1562
  %v1585 = vpack.c.b16 %v1567, %v1565
  %v1586 = vpack.c.b16 %v1568, %v1566
  %v1587 = vpack.c.b16 %v1571, %v1569
  %v1588 = vpack.c.b16 %v1572, %v1570
  %1605 = vmatprep.subr.bf16.mxu0 %v1574
  %1606 = vmatpush1.bf16.msra.mxu0 %v1573
  %1607 = vmatprep.subr.bf16.mxu0 %v1576
  %1608 = vmatpush1.bf16.msra.mxu0 %v1575
  %1609 = vmatprep.subr.bf16.mxu0 %v1578
  %1610 = vmatpush1.bf16.msra.mxu0 %v1577
  %1611 = vmatprep.subr.bf16.mxu0 %v1580
  %1612 = vmatpush1.bf16.msra.mxu0 %v1579
  %1613 = vmatprep.subr.bf16.mxu0 %v1582
  %1614 = vmatpush1.bf16.msra.mxu0 %v1581
  %1615 = vmatprep.subr.bf16.mxu0 %v1584
  %1616 = vmatpush1.bf16.msra.mxu0 %v1583
  %1617 = vmatprep.subr.bf16.mxu0 %v1586
  %1618 = vmatpush1.bf16.msra.mxu0 %v1585
  %1619 = vmatprep.subr.bf16.mxu0 %v1588
  %1620 = vmatpush1.bf16.msra.mxu0 %v1587
  %1621 = vmatprep.subr.bf16.mxu0 0
  %1622 = vmatpush1.bf16.msra.mxu0 0
  %1623 = vmatprep.subr.bf16.mxu0 0
  %1624 = vmatpush1.bf16.msra.mxu0 0
  %1625 = vmatprep.subr.bf16.mxu0 0
  %1626 = vmatpush1.bf16.msra.mxu0 0
  %1627 = vmatprep.subr.bf16.mxu0 0
  %1628 = vmatpush1.bf16.msra.mxu0 0
  %1629 = vmatprep.subr.bf16.mxu0 0
  %1630 = vmatpush1.bf16.msra.mxu0 0
  %1631 = vmatprep.subr.bf16.mxu0 0
  %1632 = vmatpush1.bf16.msra.mxu0 0
  %1633 = vmatprep.subr.bf16.mxu0 0
  %1634 = vmatpush1.bf16.msra.mxu0 0
  %1635 = vmatprep.subr.bf16.mxu0 0
  %1636 = vmatpush1.bf16.msra.mxu0 0
  %1637 = vmatprep.mubr.bf16.mxu0 0
  %1638 = vmatmul.mubr.bf16.gmra.mrb[0].mxu0 %v1490
  %v1639 = vpop.f32.mrb[0].mxu0
  %v1640 = vadd.f32 0.0, %v1639
  %v1641 = vpop.f32.mrb[0].mxu0
  %v1642 = vadd.f32 0.0, %v1641
  %v1643 = vpop.f32.mrb[0].mxu0
  %v1644 = vpop.f32.mrb[0].mxu0
  %1645 = vdwg.mxu0
  %v1662 = vunpack.c.l.b16 %v1492
  %v1663 = vunpack.c.h.b16 %v1492
  %v1664 = vunpack.c.l.b16 %v1493
  %v1665 = vunpack.c.h.b16 %v1493
  %v1666 = vunpack.c.l.b16 %v1494
  %v1667 = vunpack.c.h.b16 %v1494
  %v1668 = vunpack.c.l.b16 %v1495
  %v1669 = vunpack.c.h.b16 %v1495
  %v1670 = vunpack.c.l.b16 %v1496
  %v1671 = vunpack.c.h.b16 %v1496
  %v1672 = vunpack.c.l.b16 %v1497
  %v1673 = vunpack.c.h.b16 %v1497
  %v1674 = vunpack.c.l.b16 %v1498
  %v1675 = vunpack.c.h.b16 %v1498
  %v1676 = vunpack.c.l.b16 %v1499
  %v1677 = vunpack.c.h.b16 %v1499
  %v1678 = vunpack.c.l.b16 %v1500
  %v1679 = vunpack.c.h.b16 %v1500
  %v1680 = vunpack.c.l.b16 %v1501
  %v1681 = vunpack.c.h.b16 %v1501
  %v1682 = vunpack.c.l.b16 %v1502
  %v1683 = vunpack.c.h.b16 %v1502
  %v1684 = vunpack.c.l.b16 %v1503
  %v1685 = vunpack.c.h.b16 %v1503
  %v1686 = vunpack.c.l.b16 %v1504
  %v1687 = vunpack.c.h.b16 %v1504
  %v1688 = vunpack.c.l.b16 %v1505
  %v1689 = vunpack.c.h.b16 %v1505
  %v1690 = vunpack.c.l.b16 %v1506
  %v1691 = vunpack.c.h.b16 %v1506
  %v1692 = vunpack.c.l.b16 %v1507
  %v1693 = vunpack.c.h.b16 %v1507
  %v1694 = vpack.c.b16 %v1664, %v1662
  %v1695 = vpack.c.b16 %v1665, %v1663
  %v1696 = vpack.c.b16 %v1668, %v1666
  %v1697 = vpack.c.b16 %v1669, %v1667
  %v1698 = vpack.c.b16 %v1672, %v1670
  %v1699 = vpack.c.b16 %v1673, %v1671
  %v1700 = vpack.c.b16 %v1676, %v1674
  %v1701 = vpack.c.b16 %v1677, %v1675
  %v1702 = vpack.c.b16 %v1680, %v1678
  %v1703 = vpack.c.b16 %v1681, %v1679
  %v1704 = vpack.c.b16 %v1684, %v1682
  %v1705 = vpack.c.b16 %v1685, %v1683
  %v1706 = vpack.c.b16 %v1688, %v1686
  %v1707 = vpack.c.b16 %v1689, %v1687
  %v1708 = vpack.c.b16 %v1692, %v1690
  %v1709 = vpack.c.b16 %v1693, %v1691
  %1726 = vmatprep.subr.bf16.mxu0 %v1695
  %1727 = vmatpush1.bf16.msra.mxu0 %v1694
  %1728 = vmatprep.subr.bf16.mxu0 %v1697
  %1729 = vmatpush1.bf16.msra.mxu0 %v1696
  %1730 = vmatprep.subr.bf16.mxu0 %v1699
  %1731 = vmatpush1.bf16.msra.mxu0 %v1698
  %1732 = vmatprep.subr.bf16.mxu0 %v1701
  %1733 = vmatpush1.bf16.msra.mxu0 %v1700
  %1734 = vmatprep.subr.bf16.mxu0 %v1703
  %1735 = vmatpush1.bf16.msra.mxu0 %v1702
  %1736 = vmatprep.subr.bf16.mxu0 %v1705
  %1737 = vmatpush1.bf16.msra.mxu0 %v1704
  %1738 = vmatprep.subr.bf16.mxu0 %v1707
  %1739 = vmatpush1.bf16.msra.mxu0 %v1706
  %1740 = vmatprep.subr.bf16.mxu0 %v1709
  %1741 = vmatpush1.bf16.msra.mxu0 %v1708
  %1742 = vmatprep.subr.bf16.mxu0 0
  %1743 = vmatpush1.bf16.msra.mxu0 0
  %1744 = vmatprep.subr.bf16.mxu0 0
  %1745 = vmatpush1.bf16.msra.mxu0 0
  %1746 = vmatprep.subr.bf16.mxu0 0
  %1747 = vmatpush1.bf16.msra.mxu0 0
  %1748 = vmatprep.subr.bf16.mxu0 0
  %1749 = vmatpush1.bf16.msra.mxu0 0
  %1750 = vmatprep.subr.bf16.mxu0 0
  %1751 = vmatpush1.bf16.msra.mxu0 0
  %1752 = vmatprep.subr.bf16.mxu0 0
  %1753 = vmatpush1.bf16.msra.mxu0 0
  %1754 = vmatprep.subr.bf16.mxu0 0
  %1755 = vmatpush1.bf16.msra.mxu0 0
  %1756 = vmatprep.subr.bf16.mxu0 0
  %1757 = vmatpush1.bf16.msra.mxu0 0
  %1758 = vmatprep.mubr.bf16.mxu0 0
  %1759 = vmatmul.mubr.bf16.gmra.mrb[0].mxu0 %v1489
  %v1760 = vpop.f32.mrb[0].mxu0
  %v1761 = vadd.f32 %v1640, %v1760
  %v1762 = vpop.f32.mrb[0].mxu0
  %v1763 = vadd.f32 %v1642, %v1762
  %v1764 = vpop.f32.mrb[0].mxu0
  %v1765 = vpop.f32.mrb[0].mxu0
  %1766 = vdwg.mxu0
  %1767 = vst [vmem:[#allocation2] sm:$0x3f] %v1761
  %1768 = vst [vmem:[#allocation2 + $0x8] sm:$0x3f] %v1763
  %s1769 = scalar_lea.vmem %s3, 3
  %v1770 = vld [vmem:[%s1769] sm:$0x1]
  %v1771 = vld [vmem:[#allocation2] sm:$0x3]
  %v1772 = vld [vmem:[#allocation2 + $0x8] sm:$0x6]
  %v1774 = vrot.slane %v1772, 1
  %v1776 = vadd.f32 %v1771, %v1774
  %v1778 = vlaneseq
  %v1779 = vshrl.u32 %v1778, 7
  %v1780 = vsub.s32 0, %v1779
  %v1781 = vrot.slane %v1770, %v1780
  %v1783 = vadd.f32 %v1776, %v1781
  %v1784 = vmul.f32 %v1783, 0.2
  %v1785 = vmax.f32 %v1783, %v1784
  %1786 = vst [vmem:[%s13] sm:$0x3] %v1785
  %v1787 = vld [vmem:[#allocation2] sm:$0x18]
  %v1788 = vld [vmem:[#allocation2 + $0x8] sm:$0x30]
  %v1790 = vrot.slane %v1788, 1
  %v1792 = vadd.f32 %v1787, %v1790
  %v1793 = vadd.f32 %v1792, %v1781
  %v1794 = vmul.f32 %v1793, 0.2
  %v1795 = vmax.f32 %v1793, %v1794
  %1796 = vst [vmem:[%s13 - $0x1] sm:$0x18] %v1795
  %v1797 = vld [vmem:[%s13] sm:$0xf]
  %v1798 = vpack.c.bf16 %v1797, %v1797
  %v1799 = vld [vmem:[%s7] sm:$0x1]
  %vm1800 = vcmask 31744
  %v1802 = vsel %vm1800, %v1799, 0
  %vm1804 = vcmask 1041408
  %v1806 = vsel %vm1804, %v1798, 0
  %1808 = vmatprep.subr.bf16.mxu0 0
  %1809 = vmatpush1.bf16.msra.mxu0 %v1806
  %1810 = vmatprep.subr.bf16.mxu0 0
  %1811 = vmatpush1.bf16.msra.mxu0 0
  %1812 = vmatprep.subr.bf16.mxu0 0
  %1813 = vmatpush1.bf16.msra.mxu0 0
  %1814 = vmatprep.subr.bf16.mxu0 0
  %1815 = vmatpush1.bf16.msra.mxu0 0
  %1816 = vmatprep.subr.bf16.mxu0 0
  %1817 = vmatpush1.bf16.msra.mxu0 0
  %1818 = vmatprep.subr.bf16.mxu0 0
  %1819 = vmatpush1.bf16.msra.mxu0 0
  %1820 = vmatprep.subr.bf16.mxu0 0
  %1821 = vmatpush1.bf16.msra.mxu0 0
  %1822 = vmatprep.subr.bf16.mxu0 0
  %1823 = vmatpush1.bf16.msra.mxu0 0
  %1824 = vmatprep.subr.bf16.mxu0 0
  %1825 = vmatpush1.bf16.msra.mxu0 0
  %1826 = vmatprep.subr.bf16.mxu0 0
  %1827 = vmatpush1.bf16.msra.mxu0 0
  %1828 = vmatprep.subr.bf16.mxu0 0
  %1829 = vmatpush1.bf16.msra.mxu0 0
  %1830 = vmatprep.subr.bf16.mxu0 0
  %1831 = vmatpush1.bf16.msra.mxu0 0
  %1832 = vmatprep.subr.bf16.mxu0 0
  %1833 = vmatpush1.bf16.msra.mxu0 0
  %1834 = vmatprep.subr.bf16.mxu0 0
  %1835 = vmatpush1.bf16.msra.mxu0 0
  %1836 = vmatprep.subr.bf16.mxu0 0
  %1837 = vmatpush1.bf16.msra.mxu0 0
  %1838 = vmatprep.subr.bf16.mxu0 0
  %1839 = vmatpush1.bf16.msra.mxu0 0
  %1840 = vmatprep.mubr.bf16.mxu0 0
  %1841 = vmatmul.mubr.bf16.gmra.mrb[0].mxu0 %v1802
  %v1842 = vpop.f32.mrb[0].mxu0
  %v1843 = vadd.f32 0.0, %v1842
  %v1844 = vpop.f32.mrb[0].mxu0
  %v1845 = vpop.f32.mrb[0].mxu0
  %v1846 = vpop.f32.mrb[0].mxu0
  %1847 = vdwg.mxu0
  %v1848 = vpack.c.bf16 %v1843, %v1843
  %v1849 = vld [vmem:[%s8] sm:$0xf]
  %v1850 = vld [vmem:[%s8 + $0x4] sm:$0xf]
  %v1851 = vld [vmem:[%s8 + $0x8] sm:$0xf]
  %v1852 = vld [vmem:[%s8 + $0xc] sm:$0xf]
  %v1853 = vld [vmem:[%s8 + $0x10] sm:$0xf]
  %v1854 = vld [vmem:[%s8 + $0x14] sm:$0xf]
  %v1855 = vld [vmem:[%s8 + $0x18] sm:$0xf]
  %v1856 = vld [vmem:[%s8 + $0x1c] sm:$0xf]
  %v1857 = vld [vmem:[%s8 + $0x20] sm:$0xf]
  %v1858 = vld [vmem:[%s8 + $0x24] sm:$0xf]
  %v1859 = vld [vmem:[%s8 + $0x28] sm:$0xf]
  %v1860 = vld [vmem:[%s8 + $0x2c] sm:$0xf]
  %v1861 = vld [vmem:[%s8 + $0x30] sm:$0xf]
  %v1862 = vld [vmem:[%s8 + $0x34] sm:$0xf]
  %v1863 = vld [vmem:[%s8 + $0x38] sm:$0xf]
  %v1864 = vld [vmem:[%s8 + $0x3c] sm:$0xf]
  %s1865 = scalar_lea.vmem %s7, 1
  %v1866 = vld [vmem:[%s1865] sm:$0x1]
  %v1868 = vsel %vm1800, %v1866, 0
  %1870 = vmatprep.subr.bf16.mxu0 0
  %1871 = vmatpush1.bf16.msra.mxu0 %v1806
  %1872 = vmatprep.subr.bf16.mxu0 0
  %1873 = vmatpush1.bf16.msra.mxu0 0
  %1874 = vmatprep.subr.bf16.mxu0 0
  %1875 = vmatpush1.bf16.msra.mxu0 0
  %1876 = vmatprep.subr.bf16.mxu0 0
  %1877 = vmatpush1.bf16.msra.mxu0 0
  %1878 = vmatprep.subr.bf16.mxu0 0
  %1879 = vmatpush1.bf16.msra.mxu0 0
  %1880 = vmatprep.subr.bf16.mxu0 0
  %1881 = vmatpush1.bf16.msra.mxu0 0
  %1882 = vmatprep.subr.bf16.mxu0 0
  %1883 = vmatpush1.bf16.msra.mxu0 0
  %1884 = vmatprep.subr.bf16.mxu0 0
  %1885 = vmatpush1.bf16.msra.mxu0 0
  %1886 = vmatprep.subr.bf16.mxu0 0
  %1887 = vmatpush1.bf16.msra.mxu0 0
  %1888 = vmatprep.subr.bf16.mxu0 0
  %1889 = vmatpush1.bf16.msra.mxu0 0
  %1890 = vmatprep.subr.bf16.mxu0 0
  %1891 = vmatpush1.bf16.msra.mxu0 0
  %1892 = vmatprep.subr.bf16.mxu0 0
  %1893 = vmatpush1.bf16.msra.mxu0 0
  %1894 = vmatprep.subr.bf16.mxu0 0
  %1895 = vmatpush1.bf16.msra.mxu0 0
  %1896 = vmatprep.subr.bf16.mxu0 0
  %1897 = vmatpush1.bf16.msra.mxu0 0
  %1898 = vmatprep.subr.bf16.mxu0 0
  %1899 = vmatpush1.bf16.msra.mxu0 0
  %1900 = vmatprep.subr.bf16.mxu0 0
  %1901 = vmatpush1.bf16.msra.mxu0 0
  %1902 = vmatprep.mubr.bf16.mxu0 0
  %1903 = vmatmul.mubr.bf16.gmra.mrb[0].mxu0 %v1868
  %v1904 = vpop.f32.mrb[0].mxu0
  %v1905 = vadd.f32 0.0, %v1904
  %v1906 = vpop.f32.mrb[0].mxu0
  %v1907 = vpop.f32.mrb[0].mxu0
  %v1908 = vpop.f32.mrb[0].mxu0
  %1909 = vdwg.mxu0
  %v1910 = vpack.c.bf16 %v1905, %v1905
  %s1911 = scalar_lea.vmem %s8, 64
  %v1912 = vld [vmem:[%s1911] sm:$0xf]
  %v1913 = vld [vmem:[%s1911 + $0x4] sm:$0xf]
  %v1914 = vld [vmem:[%s1911 + $0x8] sm:$0xf]
  %v1915 = vld [vmem:[%s1911 + $0xc] sm:$0xf]
  %v1916 = vld [vmem:[%s1911 + $0x10] sm:$0xf]
  %v1917 = vld [vmem:[%s1911 + $0x14] sm:$0xf]
  %v1918 = vld [vmem:[%s1911 + $0x18] sm:$0xf]
  %v1919 = vld [vmem:[%s1911 + $0x1c] sm:$0xf]
  %v1920 = vld [vmem:[%s1911 + $0x20] sm:$0xf]
  %v1921 = vld [vmem:[%s1911 + $0x24] sm:$0xf]
  %v1922 = vld [vmem:[%s1911 + $0x28] sm:$0xf]
  %v1923 = vld [vmem:[%s1911 + $0x2c] sm:$0xf]
  %v1924 = vld [vmem:[%s1911 + $0x30] sm:$0xf]
  %v1925 = vld [vmem:[%s1911 + $0x34] sm:$0xf]
  %v1926 = vld [vmem:[%s1911 + $0x38] sm:$0xf]
  %v1927 = vld [vmem:[%s1911 + $0x3c] sm:$0xf]
  %v1944 = vunpack.c.l.b16 %v1912
  %v1945 = vunpack.c.l.b16 %v1913
  %v1946 = vunpack.c.l.b16 %v1914
  %v1947 = vunpack.c.l.b16 %v1915
  %v1948 = vunpack.c.l.b16 %v1916
  %v1949 = vunpack.c.l.b16 %v1917
  %v1950 = vunpack.c.l.b16 %v1918
  %v1951 = vunpack.c.l.b16 %v1919
  %v1952 = vunpack.c.l.b16 %v1920
  %v1953 = vunpack.c.l.b16 %v1921
  %v1954 = vunpack.c.l.b16 %v1922
  %v1955 = vunpack.c.l.b16 %v1923
  %v1956 = vunpack.c.l.b16 %v1924
  %v1957 = vunpack.c.l.b16 %v1925
  %v1958 = vunpack.c.l.b16 %v1926
  %v1959 = vunpack.c.l.b16 %v1927
  %v1960 = vpack.c.b16 %v1945, %v1944
  %v1961 = vpack.c.b16 %v1947, %v1946
  %v1962 = vpack.c.b16 %v1949, %v1948
  %v1963 = vpack.c.b16 %v1951, %v1950
  %v1964 = vpack.c.b16 %v1953, %v1952
  %v1965 = vpack.c.b16 %v1955, %v1954
  %v1966 = vpack.c.b16 %v1957, %v1956
  %v1967 = vpack.c.b16 %v1959, %v1958
  %1976 = vmatprep.subr.bf16.mxu0 0
  %1977 = vmatpush1.bf16.msra.mxu0 %v1960
  %1978 = vmatprep.subr.bf16.mxu0 0
  %1979 = vmatpush1.bf16.msra.mxu0 %v1961
  %1980 = vmatprep.subr.bf16.mxu0 0
  %1981 = vmatpush1.bf16.msra.mxu0 %v1962
  %1982 = vmatprep.subr.bf16.mxu0 0
  %1983 = vmatpush1.bf16.msra.mxu0 %v1963
  %1984 = vmatprep.subr.bf16.mxu0 0
  %1985 = vmatpush1.bf16.msra.mxu0 %v1964
  %1986 = vmatprep.subr.bf16.mxu0 0
  %1987 = vmatpush1.bf16.msra.mxu0 %v1965
  %1988 = vmatprep.subr.bf16.mxu0 0
  %1989 = vmatpush1.bf16.msra.mxu0 %v1966
  %1990 = vmatprep.subr.bf16.mxu0 0
  %1991 = vmatpush1.bf16.msra.mxu0 %v1967
  %1992 = vmatprep.subr.bf16.mxu0 0
  %1993 = vmatpush1.bf16.msra.mxu0 0
  %1994 = vmatprep.subr.bf16.mxu0 0
  %1995 = vmatpush1.bf16.msra.mxu0 0
  %1996 = vmatprep.subr.bf16.mxu0 0
  %1997 = vmatpush1.bf16.msra.mxu0 0
  %1998 = vmatprep.subr.bf16.mxu0 0
  %1999 = vmatpush1.bf16.msra.mxu0 0
  %2000 = vmatprep.subr.bf16.mxu0 0
  %2001 = vmatpush1.bf16.msra.mxu0 0
  %2002 = vmatprep.subr.bf16.mxu0 0
  %2003 = vmatpush1.bf16.msra.mxu0 0
  %2004 = vmatprep.subr.bf16.mxu0 0
  %2005 = vmatpush1.bf16.msra.mxu0 0
  %2006 = vmatprep.subr.bf16.mxu0 0
  %2007 = vmatpush1.bf16.msra.mxu0 0
  %2008 = vmatprep.mubr.bf16.mxu0 0
  %2009 = vmatmul.mubr.bf16.gmra.mrb[0].mxu0 %v1910
  %v2010 = vpop.f32.mrb[0].mxu0
  %v2011 = vadd.f32 0.0, %v2010
  %v2012 = vpop.f32.mrb[0].mxu0
  %v2013 = vpop.f32.mrb[0].mxu0
  %v2014 = vpop.f32.mrb[0].mxu0
  %2015 = vdwg.mxu0
  %v2032 = vunpack.c.l.b16 %v1849
  %v2033 = vunpack.c.l.b16 %v1850
  %v2034 = vunpack.c.l.b16 %v1851
  %v2035 = vunpack.c.l.b16 %v1852
  %v2036 = vunpack.c.l.b16 %v1853
  %v2037 = vunpack.c.l.b16 %v1854
  %v2038 = vunpack.c.l.b16 %v1855
  %v2039 = vunpack.c.l.b16 %v1856
  %v2040 = vunpack.c.l.b16 %v1857
  %v2041 = vunpack.c.l.b16 %v1858
  %v2042 = vunpack.c.l.b16 %v1859
  %v2043 = vunpack.c.l.b16 %v1860
  %v2044 = vunpack.c.l.b16 %v1861
  %v2045 = vunpack.c.l.b16 %v1862
  %v2046 = vunpack.c.l.b16 %v1863
  %v2047 = vunpack.c.l.b16 %v1864
  %v2048 = vpack.c.b16 %v2033, %v2032
  %v2049 = vpack.c.b16 %v2035, %v2034
  %v2050 = vpack.c.b16 %v2037, %v2036
  %v2051 = vpack.c.b16 %v2039, %v2038
  %v2052 = vpack.c.b16 %v2041, %v2040
  %v2053 = vpack.c.b16 %v2043, %v2042
  %v2054 = vpack.c.b16 %v2045, %v2044
  %v2055 = vpack.c.b16 %v2047, %v2046
  %2064 = vmatprep.subr.bf16.mxu0 0
  %2065 = vmatpush1.bf16.msra.mxu0 %v2048
  %2066 = vmatprep.subr.bf16.mxu0 0
  %2067 = vmatpush1.bf16.msra.mxu0 %v2049
  %2068 = vmatprep.subr.bf16.mxu0 0
  %2069 = vmatpush1.bf16.msra.mxu0 %v2050
  %2070 = vmatprep.subr.bf16.mxu0 0
  %2071 = vmatpush1.bf16.msra.mxu0 %v2051
  %2072 = vmatprep.subr.bf16.mxu0 0
  %2073 = vmatpush1.bf16.msra.mxu0 %v2052
  %2074 = vmatprep.subr.bf16.mxu0 0
  %2075 = vmatpush1.bf16.msra.mxu0 %v2053
  %2076 = vmatprep.subr.bf16.mxu0 0
  %2077 = vmatpush1.bf16.msra.mxu0 %v2054
  %2078 = vmatprep.subr.bf16.mxu0 0
  %2079 = vmatpush1.bf16.msra.mxu0 %v2055
  %2080 = vmatprep.subr.bf16.mxu0 0
  %2081 = vmatpush1.bf16.msra.mxu0 0
  %2082 = vmatprep.subr.bf16.mxu0 0
  %2083 = vmatpush1.bf16.msra.mxu0 0
  %2084 = vmatprep.subr.bf16.mxu0 0
  %2085 = vmatpush1.bf16.msra.mxu0 0
  %2086 = vmatprep.subr.bf16.mxu0 0
  %2087 = vmatpush1.bf16.msra.mxu0 0
  %2088 = vmatprep.subr.bf16.mxu0 0
  %2089 = vmatpush1.bf16.msra.mxu0 0
  %2090 = vmatprep.subr.bf16.mxu0 0
  %2091 = vmatpush1.bf16.msra.mxu0 0
  %2092 = vmatprep.subr.bf16.mxu0 0
  %2093 = vmatpush1.bf16.msra.mxu0 0
  %2094 = vmatprep.subr.bf16.mxu0 0
  %2095 = vmatpush1.bf16.msra.mxu0 0
  %2096 = vmatprep.mubr.bf16.mxu0 0
  %2097 = vmatmul.mubr.bf16.gmra.mrb[0].mxu0 %v1848
  %v2098 = vpop.f32.mrb[0].mxu0
  %v2099 = vadd.f32 %v2011, %v2098
  %v2100 = vpop.f32.mrb[0].mxu0
  %v2101 = vpop.f32.mrb[0].mxu0
  %v2102 = vpop.f32.mrb[0].mxu0
  %2103 = vdwg.mxu0
  %v2104 = vxor.u32 %v2099, 2147483648
  %v2105 = vmul.f32 %v2104, 1.442695
  %v2106 = vpow.pop %v2105
  %v2107 = vadd.f32 %v2106, 1.0
  %v2108 = vrcp.pop %v2107
  %v2109 = vmul.f32 1.0, %v2108
  %2111 = vrot.lane.b32.xlu0 %v2109, 112
  %v2112 = vpop.permute.xlu0 %2111
  %v2114 = vmul.f32 %v2099, %v2112
  %v2115 = vld [vmem:[%s9] sm:$0x1]
  %v2116 = vld [vmem:[%s1] sm:$0x3]
  %v2118 = vlaneseq
  %v2119 = vshrl.u32 %v2118, 7
  %v2120 = vsub.s32 0, %v2119
  %v2121 = vrot.slane %v2115, %v2120
  %v2123 = vmul.f32 %v2114, %v2121
  %vm2124 = vcmask 123904
  %v2125 = vsel %vm2124, %v2123, 0.0
  %2126 = vadd.xlane.f32.xlu0 %v2125
  %v2127 = vpop.xlane.xlu0 %2126
  %2128 = vrot.lane.b32.xlu0 %v2121, 112
  %v2129 = vpop.permute.xlu0 %2128
  %v2131 = vmul.f32 %v2116, %v2129
  %vm2132 = vcmask 25600
  %v2133 = vsel %vm2132, %v2131, 0.0
  %2134 = vadd.xlane.f32.xlu0 %v2133
  %v2135 = vpop.xlane.xlu0 %2134
  %v2136 = vadd.f32 %v2127, %v2135
  %vm2137 = vcmask 1024
  %2138 = vst.msk [vmem:[%s14] sm:$0x3] %vm2137, %v2136
  // Predicated region
  $region42: #{_lambda_.1} parent=0 // pred_check
    _
  $region43: #{_lambda_.1} parent=0 // pred_check_branch
    %2140 = sbr.rel (0) target = $region45
  $region44: #{_lambda_.1} parent=0 // pred_region
    _
  $region45: #{_lambda_.1} parent=0 // pred_fallthru
    _
  // Predicated region
  $region46: #{_lambda_.1} parent=0 // pred_check
    _
  $region47: #{_lambda_.1} parent=0 // pred_check_branch
    %2142 = sbr.rel (0) target = $region49
  $region48: #{_lambda_.1} parent=0 // pred_region
    _
  $region49: #{_lambda_.1} parent=0 // pred_fallthru
    _
  // Predicated region
  $region50: #{_lambda_.1} parent=0 // pred_check
    _
  $region51: #{_lambda_.1} parent=0 // pred_check_branch
    %2144 = sbr.rel (0) target = $region53
  $region52: #{_lambda_.1} parent=0 // pred_region
    _
  $region53: #{_lambda_.1} parent=0 // pred_fallthru
    _
  // Predicated region
  $region54: #{_lambda_.1} parent=0 // pred_check
    _
  $region55: #{_lambda_.1} parent=0 // pred_check_branch
    %2146 = sbr.rel (0) target = $region57
  $region56: #{_lambda_.1} parent=0 // pred_region
    _
  $region57: #{_lambda_.1} parent=0 // pred_fallthru
    _
  // Predicated region
  $region58: #{_lambda_.1} parent=0 // pred_check
    _
  $region59: #{_lambda_.1} parent=0 // pred_check_branch
    %2148 = sbr.rel (0) target = $region61
  $region60: #{_lambda_.1} parent=0 // pred_region
    _
  $region61: #{_lambda_.1} parent=0 // pred_fallthru
    _
  // Predicated region
  $region62: #{_lambda_.1} parent=0 // pred_check
    _
  $region63: #{_lambda_.1} parent=0 // pred_check_branch
    %2150 = sbr.rel (0) target = $region65
  $region64: #{_lambda_.1} parent=0 // pred_region
    _
  $region65: #{_lambda_.1} parent=0 // pred_fallthru
    _
  // Predicated region
  $region66: #{_lambda_.1} parent=0 // pred_check
    _
  $region67: #{_lambda_.1} parent=0 // pred_check_branch
    %2152 = sbr.rel (0) target = $region69
  $region68: #{_lambda_.1} parent=0 // pred_region
    _
  $region69: #{_lambda_.1} parent=0 // pred_fallthru
    _
  // Predicated region
  $region70: #{_lambda_.1} parent=0 // pred_check
    _
  $region71: #{_lambda_.1} parent=0 // pred_check_branch
    %2154 = sbr.rel (0) target = $region73
  $region72: #{_lambda_.1} parent=0 // pred_region
    _
  $region73: #{_lambda_.1} parent=0 // pred_fallthru
    _
  // Predicated region
  $region74: #{_lambda_.1} parent=0 // pred_check
    _
  $region75: #{_lambda_.1} parent=0 // pred_check_branch
    %2156 = sbr.rel (0) target = $region77
  $region76: #{_lambda_.1} parent=0 // pred_region
    _
  $region77: #{_lambda_.1} parent=0 // pred_fallthru
    _
  // Predicated region
  $region78: #{_lambda_.1} parent=0 // pred_check
    _
  $region79: #{_lambda_.1} parent=0 // pred_check_branch
    %2158 = sbr.rel (0) target = $region81
  $region80: #{_lambda_.1} parent=0 // pred_region
    _
  $region81: #{_lambda_.1} parent=0 // pred_fallthru
    _

</llo_original>
